<compile_context>
chip_gen: v7x
topology: tpu7x:2x2x1
jax: 0.10.0
libtpu: 0.0.40
codegen_flags: <defaults>
</compile_context>

<pallas_src>
import math
from functools import partial

import jax
import jax.numpy as jnp
from jax import lax
from jax.experimental import pallas as pl
from jax.experimental.pallas import tpu as pltpu


# ----------------------------- in-kernel helpers -----------------------------

def _layernorm(x, w, b, eps=1e-5):
    # x: (N, D) f32, w/b: (1, D).  PyTorch LayerNorm: biased variance, eps=1e-5.
    mean = jnp.mean(x, axis=-1, keepdims=True)
    xc = x - mean
    var = jnp.mean(xc * xc, axis=-1, keepdims=True)
    return xc * lax.rsqrt(var + eps) * w + b


# ------------------------------- Pallas kernel --------------------------------

def encoder_stack_kernel(x_ref,
                         wqkv_ref, bqkv_ref, wo_ref, bo_ref,
                         ln1w_ref, ln1b_ref, ln2w_ref, ln2b_ref,
                         w1_ref, b1_ref, w2_ref, b2_ref,
                         lnfw_ref, lnfb_ref,
                         o_ref, x_scr, *, nhead):
    """One grid step == one encoder layer for the whole (folded) batch.

    x_ref : (S, B, D) f32, constant block index -> loaded once.
    w*_ref: per-layer weight slabs streamed by the layer grid axis.
    x_scr : (B*S, D) f32 VMEM scratch carrying the activation across layers.
    """
    l = pl.program_id(0)
    S, B, D = x_ref.shape
    N = B * S
    hd = D // nhead
    G = nhead * B            # merged (head, batch) group axis for batched attention

    # ---- first layer: pull the (S,B,D) input into the row-major VMEM carry ----
    @pl.when(l == 0)
    def _init_carry():
        x_in = x_ref[...]                                   # (S, B, D)
        x_scr[...] = jnp.swapaxes(x_in, 0, 1).reshape(N, D)  # (B*S, D), batch-major rows

    x = x_scr[...]                                          # (N, D) f32
    xb = x.astype(jnp.bfloat16)

    # ---- fused QKV projection: one full-width matmul (scale folded into Wq/bq) ----
    qkv = jnp.dot(xb, wqkv_ref[0],
                  preferred_element_type=jnp.float32) + bqkv_ref[0]   # (N, 3D) f32

    # ---- split heads via contiguous lane slices; batch attention over (head, batch) ----
    def head_groups(off):
        cols = [qkv[:, off + h * hd: off + (h + 1) * hd].reshape(B, S, hd)
                for h in range(nhead)]
        return jnp.stack(cols, axis=0).reshape(G, S, hd).astype(jnp.bfloat16)

    q3 = head_groups(0)          # (G, S, hd) bf16, group g = h*B + b
    k3 = head_groups(D)
    v3 = head_groups(2 * D)

    s = jnp.einsum('gqe,gke->gqk', q3, k3,
                   preferred_element_type=jnp.float32)                # (G, S, S)
    s = s - jnp.max(s, axis=-1, keepdims=True)
    p = jnp.exp(s)
    p = p * pl.reciprocal(jnp.sum(p, axis=-1, keepdims=True), approx=True)
    ctx = jnp.einsum('gqk,gke->gqe', p.astype(jnp.bfloat16), v3,
                     preferred_element_type=jnp.float32)              # (G, S, hd)

    # ---- re-assemble heads into lanes and apply the FULL output projection ----
    ctx4 = ctx.reshape(nhead, B, S, hd)
    ctx2d = jnp.concatenate([ctx4[h].reshape(N, hd) for h in range(nhead)],
                            axis=-1).astype(jnp.bfloat16)             # (N, D)
    attn = jnp.dot(ctx2d, wo_ref[0],
                   preferred_element_type=jnp.float32) + bo_ref[0]    # (N, D)

    x = _layernorm(x + attn, ln1w_ref[0], ln1b_ref[0])

    # ---- feed-forward ----
    ff = jnp.dot(x.astype(jnp.bfloat16), w1_ref[0],
                 preferred_element_type=jnp.float32) + b1_ref[0]
    ff = jnp.maximum(ff, 0.0)
    ff = jnp.dot(ff.astype(jnp.bfloat16), w2_ref[0],
                 preferred_element_type=jnp.float32) + b2_ref[0]
    x = _layernorm(x + ff, ln2w_ref[0], ln2b_ref[0])

    x_scr[...] = x

    # ---- last layer: final LayerNorm + write (S, B, D) output once ----
    @pl.when(l == pl.num_programs(0) - 1)
    def _finalize():
        y = _layernorm(x, lnfw_ref[...], lnfb_ref[...])               # (N, D)
        o_ref[...] = jnp.swapaxes(y.reshape(B, S, D), 0, 1).astype(o_ref.dtype)


# --------------------------------- wrapper ------------------------------------

@partial(jax.jit, static_argnames=("nhead",))
def entity_context_encoder_forward(context, packed, *, nhead):
    """context: (seq, batch, d_model), same layout as the PyTorch module (batch_first=False)."""
    S, B, D = context.shape
    L = packed["wqkv"].shape[0]
    x = context.astype(jnp.float32)

    order = ("wqkv", "bqkv", "wo", "bo", "ln1w", "ln1b", "ln2w", "ln2b",
             "w1", "b1", "w2", "b2")
    layer_params = [packed[k] for k in order]
    final_params = [packed["lnfw"], packed["lnfb"]]

    def layer_spec(a):          # stream one layer's slab per grid step
        nd = a.ndim
        return pl.BlockSpec((1,) + a.shape[1:],
                            lambda l, _nd=nd: (l,) + (0,) * (_nd - 1))

    def const_spec(a):          # resident across the whole grid
        nd = a.ndim
        return pl.BlockSpec(a.shape, lambda l, _nd=nd: (0,) * _nd)

    tok_spec = pl.BlockSpec((S, B, D), lambda l: (0, 0, 0))
    # NOTE: with D < 128 the single HBM writeback at grid end is a masked store; at real
    # sizes present a lane-dense (e.g. (B, S*D)) view here, negligible at these shapes.

    kern = partial(encoder_stack_kernel, nhead=nhead)
    out = pl.pallas_call(
        kern,
        out_shape=jax.ShapeDtypeStruct((S, B, D), jnp.float32),
        grid_spec=pltpu.PrefetchScalarGridSpec(
            num_scalar_prefetch=0,
            grid=(L,),                       # grid over layers, activation carried in VMEM
            in_specs=[tok_spec]
                     + [layer_spec(a) for a in layer_params]
                     + [const_spec(a) for a in final_params],
            out_specs=pl.BlockSpec((S, B, D), lambda l: (0, 0, 0)),
            scratch_shapes=[pltpu.VMEM((B * S, D), jnp.float32)],
        ),
        compiler_params=pltpu.CompilerParams(
            dimension_semantics=("arbitrary",),          # sequential layer carry
            vmem_limit_bytes=32 * 1024 * 1024,           # above v5e's 16 MiB scoped default
        ),
    )(x, *layer_params, *final_params)
    return out


# --------------------------- deterministic parameters -------------------------

def init_layer_params(key, d_model, dim_feedforward):
    ks = jax.random.split(key, 8)
    s = 0.05
    return dict(
        wqkv=s * jax.random.normal(ks[0], (3 * d_model, d_model), jnp.float32),
        bqkv=0.01 * jax.random.normal(ks[1], (1, 3 * d_model), jnp.float32),
        wo=s * jax.random.normal(ks[2], (d_model, d_model), jnp.float32),
        bo=0.01 * jax.random.normal(ks[3], (1, d_model), jnp.float32),
        ln1w=jnp.ones((1, d_model), jnp.float32),
        ln1b=jnp.zeros((1, d_model), jnp.float32),
        ln2w=jnp.ones((1, d_model), jnp.float32),
        ln2b=jnp.zeros((1, d_model), jnp.float32),
        w1=s * jax.random.normal(ks[4], (dim_feedforward, d_model), jnp.float32),
        b1=0.01 * jax.random.normal(ks[5], (1, dim_feedforward), jnp.float32),
        w2=s * jax.random.normal(ks[6], (d_model, dim_feedforward), jnp.float32),
        b2=0.01 * jax.random.normal(ks[7], (1, d_model), jnp.float32),
    )


def pack_params(layer_params, final_ln, nhead):
    """PyTorch (out, in) weights -> kernel layout: pre-transposed to (in, out), the
    1/sqrt(hd) attention scale folded into Wq/bq, stacked over layers on axis 0, matmul
    weights cast to bf16 (biases / LN params stay f32)."""
    D = layer_params[0]["wqkv"].shape[1]
    hd = D // nhead
    scale = 1.0 / math.sqrt(hd)

    keys = ("wqkv", "bqkv", "wo", "bo", "ln1w", "ln1b", "ln2w", "ln2b",
            "w1", "b1", "w2", "b2")
    cols = {k: [] for k in keys}
    for p in layer_params:
        wqkv = p["wqkv"].T                      # (D_in, 3D_out), columns [q | k | v]
        wqkv = wqkv.at[:, :D].multiply(scale)   # fold softmax scale into Wq
        bqkv = p["bqkv"].at[:, :D].multiply(scale)
        cols["wqkv"].append(wqkv)
        cols["bqkv"].append(bqkv)
        cols["wo"].append(p["wo"].T)            # (D, D)
        cols["bo"].append(p["bo"])
        cols["ln1w"].append(p["ln1w"]); cols["ln1b"].append(p["ln1b"])
        cols["ln2w"].append(p["ln2w"]); cols["ln2b"].append(p["ln2b"])
        cols["w1"].append(p["w1"].T)            # (D, dim_ff)
        cols["b1"].append(p["b1"])
        cols["w2"].append(p["w2"].T)            # (dim_ff, D)
        cols["b2"].append(p["b2"])

    bf16_keys = {"wqkv", "wo", "w1", "w2"}
    packed = {k: jnp.stack(v, 0).astype(jnp.bfloat16 if k in bf16_keys else jnp.float32)
              for k, v in cols.items()}
    packed["lnfw"] = final_ln["w"].astype(jnp.float32)
    packed["lnfb"] = final_ln["b"].astype(jnp.float32)
    return packed


# -------------------------- pure-JAX reference (check) ------------------------

def ref_forward(context, layer_params, final_ln, *, nhead):
    S, B, D = context.shape
    x = jnp.transpose(context, (1, 0, 2)).astype(jnp.float32)   # (B, S, D)
    hd = D // nhead
    for p in layer_params:
        qkv = jnp.einsum("bsd,ed->bse", x, p["wqkv"]) + p["bqkv"][0]
        q, k, v = qkv[..., :D], qkv[..., D:2 * D], qkv[..., 2 * D:]
        q = q.reshape(B, S, nhead, hd).transpose(0, 2, 1, 3)
        k = k.reshape(B, S, nhead, hd).transpose(0, 2, 1, 3)
        v = v.reshape(B, S, nhead, hd).transpose(0, 2, 1, 3)
        a = jax.nn.softmax(jnp.einsum("bhqe,bhke->bhqk", q, k) / math.sqrt(hd), axis=-1)
        o = jnp.einsum("bhqk,bhke->bhqe", a, v).transpose(0, 2, 1, 3).reshape(B, S, D)
        o = jnp.einsum("bsd,ed->bse", o, p["wo"]) + p["bo"][0]

        def ln(y, w, b):
            m = jnp.mean(y, -1, keepdims=True)
            var = jnp.mean((y - m) ** 2, -1, keepdims=True)
            return (y - m) / jnp.sqrt(var + 1e-5) * w[0] + b[0]

        x = ln(x + o, p["ln1w"], p["ln1b"])
        ff = jax.nn.relu(jnp.einsum("bsd,fd->bsf", x, p["w1"]) + p["b1"][0])
        ff = jnp.einsum("bsf,df->bsd", ff, p["w2"]) + p["b2"][0]
        x = ln(x + ff, p["ln2w"], p["ln2b"])
    m = jnp.mean(x, -1, keepdims=True)
    var = jnp.mean((x - m) ** 2, -1, keepdims=True)
    x = (x - m) / jnp.sqrt(var + 1e-5) * final_ln["w"][0] + final_ln["b"][0]
    return jnp.transpose(x, (1, 0, 2))


# ------------------------------------ main ------------------------------------

if __name__ == "__main__":
    d_model, nhead, dim_feedforward, num_layer = 32, 4, 64, 2
    seq, batch = 8, 2

    root = jax.random.PRNGKey(0)
    key_in, *layer_keys = jax.random.split(root, num_layer + 1)

    context = jax.random.normal(key_in, (seq, batch, d_model), jnp.float32)
    layer_params = [init_layer_params(k, d_model, dim_feedforward) for k in layer_keys]
    final_ln = dict(w=jnp.ones((1, d_model), jnp.float32),
                    b=jnp.zeros((1, d_model), jnp.float32))

    packed = pack_params(layer_params, final_ln, nhead)
    out = entity_context_encoder_forward(context, packed, nhead=nhead)
    out = jax.block_until_ready(out)

    ref = ref_forward(context, layer_params, final_ln, nhead=nhead)
    assert out.shape == (seq, batch, d_model)
    # bf16 matmul operands (f32 accumulation) + approx reciprocal => relaxed tolerance;
    # real layout/semantics bugs would show up as O(1) errors.
    max_err = float(jnp.max(jnp.abs(out - ref)))
    assert jnp.allclose(out, ref, rtol=3e-2, atol=3e-2), \
        f"mismatch vs reference, max abs err={max_err}"

    print("KERNEL_OK")
</pallas_src>

<mosaic_0001>
module attributes {stable_mosaic.version = 11 : i64} {
  func.func @encoder_stack_kernel(%arg0: i32, %arg1: memref<8x2x32xf32, #tpu.memory_space<vmem>>, %arg2: memref<1x32x96xbf16, #tpu.memory_space<vmem>>, %arg3: memref<1x1x96xf32, #tpu.memory_space<vmem>>, %arg4: memref<1x32x32xbf16, #tpu.memory_space<vmem>>, %arg5: memref<1x1x32xf32, #tpu.memory_space<vmem>>, %arg6: memref<1x1x32xf32, #tpu.memory_space<vmem>>, %arg7: memref<1x1x32xf32, #tpu.memory_space<vmem>>, %arg8: memref<1x1x32xf32, #tpu.memory_space<vmem>>, %arg9: memref<1x1x32xf32, #tpu.memory_space<vmem>>, %arg10: memref<1x32x64xbf16, #tpu.memory_space<vmem>>, %arg11: memref<1x1x64xf32, #tpu.memory_space<vmem>>, %arg12: memref<1x64x32xbf16, #tpu.memory_space<vmem>>, %arg13: memref<1x1x32xf32, #tpu.memory_space<vmem>>, %arg14: memref<1x32xf32, #tpu.memory_space<vmem>>, %arg15: memref<1x32xf32, #tpu.memory_space<vmem>>, %arg16: memref<8x2x32xf32, #tpu.memory_space<vmem>>, %arg17: memref<16x32xf32, #tpu.memory_space<vmem>>) attributes {dimension_semantics = [#tpu.dimension_semantics<arbitrary>], iteration_bounds = array<i64: 2>, scalar_prefetch = 0 : i64, scratch_operands = 1 : i64, tpu.core_type = #tpu.core_type<tc>, window_params = [{pipeline_mode = #tpu.pipeline_mode<synchronous>, transform_indices = @transform_0, window_bounds = array<i64: 8, 2, 32>}, {transform_indices = @transform_1, window_bounds = array<i64: 1, 32, 96>}, {transform_indices = @transform_2, window_bounds = array<i64: 1, 1, 96>}, {transform_indices = @transform_3, window_bounds = array<i64: 1, 32, 32>}, {transform_indices = @transform_4, window_bounds = array<i64: 1, 1, 32>}, {transform_indices = @transform_5, window_bounds = array<i64: 1, 1, 32>}, {transform_indices = @transform_6, window_bounds = array<i64: 1, 1, 32>}, {transform_indices = @transform_7, window_bounds = array<i64: 1, 1, 32>}, {transform_indices = @transform_8, window_bounds = array<i64: 1, 1, 32>}, {transform_indices = @transform_9, window_bounds = array<i64: 1, 32, 64>}, {transform_indices = @transform_10, window_bounds = array<i64: 1, 1, 64>}, {transform_indices = @transform_11, window_bounds = array<i64: 1, 64, 32>}, {transform_indices = @transform_12, window_bounds = array<i64: 1, 1, 32>}, {pipeline_mode = #tpu.pipeline_mode<synchronous>, transform_indices = @transform_13, window_bounds = array<i64: 1, 32>}, {pipeline_mode = #tpu.pipeline_mode<synchronous>, transform_indices = @transform_14, window_bounds = array<i64: 1, 32>}, {pipeline_mode = #tpu.pipeline_mode<synchronous>, transform_indices = @transform_15, window_bounds = array<i64: 8, 2, 32>}]} {
    %c0_i32 = arith.constant 0 : i32
    %0 = arith.cmpi eq, %arg0, %c0_i32 : i32
    %1 = arith.extui %0 : i1 to i32
    %c0_i32_0 = arith.constant 0 : i32
    %2 = arith.cmpi ne, %1, %c0_i32_0 : i32
    scf.if %2 {
      %c0_59 = arith.constant 0 : index
      %c0_60 = arith.constant 0 : index
      %c0_61 = arith.constant 0 : index
      %164 = vector.load %arg1[%c0_59, %c0_60, %c0_61] : memref<8x2x32xf32, #tpu.memory_space<vmem>>, vector<8x2x32xf32>
      %165 = tpu.transpose %164, [1, 0, 2] : vector<8x2x32xf32> -> vector<2x8x32xf32>
      %166 = vector.shape_cast %165 : vector<2x8x32xf32> to vector<16x32xf32>
      %c0_62 = arith.constant 0 : index
      %c0_63 = arith.constant 0 : index
      %167 = vector.load %arg17[%c0_62, %c0_63] : memref<16x32xf32, #tpu.memory_space<vmem>>, vector<16x32xf32>
      tpu.vector_store %arg17[%c0_62, %c0_63], %166 {strides = array<i32>} : memref<16x32xf32, #tpu.memory_space<vmem>>, vector<16x32xf32>,
    } else {
    }
    %c0 = arith.constant 0 : index
    %c0_1 = arith.constant 0 : index
    %3 = vector.load %arg17[%c0, %c0_1] : memref<16x32xf32, #tpu.memory_space<vmem>>, vector<16x32xf32>
    %4 = arith.truncf %3 : vector<16x32xf32> to vector<16x32xbf16>
    %c0_2 = arith.constant 0 : index
    %c0_3 = arith.constant 0 : index
    %c0_4 = arith.constant 0 : index
    %5 = vector.load %arg2[%c0_2, %c0_3, %c0_4] : memref<1x32x96xbf16, #tpu.memory_space<vmem>>, vector<1x32x96xbf16>
    %6 = vector.shape_cast %5 : vector<1x32x96xbf16> to vector<32x96xbf16>
    %cst = arith.constant dense<0.000000e+00> : vector<16x96xf32>
    %7 = tpu.matmul %4, %6, %cst {dimension_numbers = #tpu.dot_dimension_numbers<[1], [0], [0], [1], [0, 0, 1, 1], [], []>} : vector<16x32xbf16>, vector<32x96xbf16>, vector<16x96xf32> -> vector<16x96xf32>
    %c0_5 = arith.constant 0 : index
    %c0_6 = arith.constant 0 : index
    %c0_7 = arith.constant 0 : index
    %8 = vector.load %arg3[%c0_5, %c0_6, %c0_7] : memref<1x1x96xf32, #tpu.memory_space<vmem>>, vector<1x1x96xf32>
    %9 = vector.shape_cast %8 : vector<1x1x96xf32> to vector<1x96xf32>
    %10 = vector.broadcast %9 : vector<1x96xf32> to vector<16x96xf32>
    %11 = arith.addf %7, %10 : vector<16x96xf32>
    %12 = vector.extract_strided_slice %11 {offsets = [0, 0], sizes = [16, 8], strides = [1, 1]} : vector<16x96xf32> to vector<16x8xf32>
    %13 = vector.shape_cast %12 : vector<16x8xf32> to vector<2x8x8xf32>
    %14 = vector.extract_strided_slice %11 {offsets = [0, 8], sizes = [16, 8], strides = [1, 1]} : vector<16x96xf32> to vector<16x8xf32>
    %15 = vector.shape_cast %14 : vector<16x8xf32> to vector<2x8x8xf32>
    %16 = vector.extract_strided_slice %11 {offsets = [0, 16], sizes = [16, 8], strides = [1, 1]} : vector<16x96xf32> to vector<16x8xf32>
    %17 = vector.shape_cast %16 : vector<16x8xf32> to vector<2x8x8xf32>
    %18 = vector.extract_strided_slice %11 {offsets = [0, 24], sizes = [16, 8], strides = [1, 1]} : vector<16x96xf32> to vector<16x8xf32>
    %19 = vector.shape_cast %18 : vector<16x8xf32> to vector<2x8x8xf32>
    %20 = vector.shape_cast %13 : vector<2x8x8xf32> to vector<1x2x8x8xf32>
    %21 = vector.shape_cast %15 : vector<2x8x8xf32> to vector<1x2x8x8xf32>
    %22 = vector.shape_cast %17 : vector<2x8x8xf32> to vector<1x2x8x8xf32>
    %23 = vector.shape_cast %19 : vector<2x8x8xf32> to vector<1x2x8x8xf32>
    %24 = tpu.concatenate %20, %21, %22, %23 in 0 : vector<1x2x8x8xf32>, vector<1x2x8x8xf32>, vector<1x2x8x8xf32>, vector<1x2x8x8xf32> -> vector<4x2x8x8xf32>
    %25 = vector.shape_cast %24 : vector<4x2x8x8xf32> to vector<8x8x8xf32>
    %26 = arith.truncf %25 : vector<8x8x8xf32> to vector<8x8x8xbf16>
    %27 = vector.extract_strided_slice %11 {offsets = [0, 32], sizes = [16, 8], strides = [1, 1]} : vector<16x96xf32> to vector<16x8xf32>
    %28 = vector.shape_cast %27 : vector<16x8xf32> to vector<2x8x8xf32>
    %29 = vector.extract_strided_slice %11 {offsets = [0, 40], sizes = [16, 8], strides = [1, 1]} : vector<16x96xf32> to vector<16x8xf32>
    %30 = vector.shape_cast %29 : vector<16x8xf32> to vector<2x8x8xf32>
    %31 = vector.extract_strided_slice %11 {offsets = [0, 48], sizes = [16, 8], strides = [1, 1]} : vector<16x96xf32> to vector<16x8xf32>
    %32 = vector.shape_cast %31 : vector<16x8xf32> to vector<2x8x8xf32>
    %33 = vector.extract_strided_slice %11 {offsets = [0, 56], sizes = [16, 8], strides = [1, 1]} : vector<16x96xf32> to vector<16x8xf32>
    %34 = vector.shape_cast %33 : vector<16x8xf32> to vector<2x8x8xf32>
    %35 = vector.shape_cast %28 : vector<2x8x8xf32> to vector<1x2x8x8xf32>
    %36 = vector.shape_cast %30 : vector<2x8x8xf32> to vector<1x2x8x8xf32>
    %37 = vector.shape_cast %32 : vector<2x8x8xf32> to vector<1x2x8x8xf32>
    %38 = vector.shape_cast %34 : vector<2x8x8xf32> to vector<1x2x8x8xf32>
    %39 = tpu.concatenate %35, %36, %37, %38 in 0 : vector<1x2x8x8xf32>, vector<1x2x8x8xf32>, vector<1x2x8x8xf32>, vector<1x2x8x8xf32> -> vector<4x2x8x8xf32>
    %40 = vector.shape_cast %39 : vector<4x2x8x8xf32> to vector<8x8x8xf32>
    %41 = arith.truncf %40 : vector<8x8x8xf32> to vector<8x8x8xbf16>
    %42 = vector.extract_strided_slice %11 {offsets = [0, 64], sizes = [16, 8], strides = [1, 1]} : vector<16x96xf32> to vector<16x8xf32>
    %43 = vector.shape_cast %42 : vector<16x8xf32> to vector<2x8x8xf32>
    %44 = vector.extract_strided_slice %11 {offsets = [0, 72], sizes = [16, 8], strides = [1, 1]} : vector<16x96xf32> to vector<16x8xf32>
    %45 = vector.shape_cast %44 : vector<16x8xf32> to vector<2x8x8xf32>
    %46 = vector.extract_strided_slice %11 {offsets = [0, 80], sizes = [16, 8], strides = [1, 1]} : vector<16x96xf32> to vector<16x8xf32>
    %47 = vector.shape_cast %46 : vector<16x8xf32> to vector<2x8x8xf32>
    %48 = vector.extract_strided_slice %11 {offsets = [0, 88], sizes = [16, 8], strides = [1, 1]} : vector<16x96xf32> to vector<16x8xf32>
    %49 = vector.shape_cast %48 : vector<16x8xf32> to vector<2x8x8xf32>
    %50 = vector.shape_cast %43 : vector<2x8x8xf32> to vector<1x2x8x8xf32>
    %51 = vector.shape_cast %45 : vector<2x8x8xf32> to vector<1x2x8x8xf32>
    %52 = vector.shape_cast %47 : vector<2x8x8xf32> to vector<1x2x8x8xf32>
    %53 = vector.shape_cast %49 : vector<2x8x8xf32> to vector<1x2x8x8xf32>
    %54 = tpu.concatenate %50, %51, %52, %53 in 0 : vector<1x2x8x8xf32>, vector<1x2x8x8xf32>, vector<1x2x8x8xf32>, vector<1x2x8x8xf32> -> vector<4x2x8x8xf32>
    %55 = vector.shape_cast %54 : vector<4x2x8x8xf32> to vector<8x8x8xf32>
    %56 = arith.truncf %55 : vector<8x8x8xf32> to vector<8x8x8xbf16>
    "tpu.trace_start"() <{level = 10 : i32, message = "gqe,gke->gqk"}> : () -> ()
    %cst_8 = arith.constant dense<0.000000e+00> : vector<8x8x8xf32>
    %57 = tpu.matmul %26, %41, %cst_8 {dimension_numbers = #tpu.dot_dimension_numbers<[2], [2], [1], [1], [0, 0, 0, 1, 1, 1], [0], [0]>} : vector<8x8x8xbf16>, vector<8x8x8xbf16>, vector<8x8x8xf32> -> vector<8x8x8xf32>
    "tpu.trace_stop"() : () -> ()
    %cst_9 = arith.constant dense<0xFF800000> : vector<8x8xf32>
    %58 = vector.multi_reduction <maximumf>, %57, %cst_9 [2] : vector<8x8x8xf32> to vector<8x8xf32>
    %59 = vector.shape_cast %58 : vector<8x8xf32> to vector<8x8x1xf32>
    %60 = vector.broadcast %59 : vector<8x8x1xf32> to vector<8x8x8xf32>
    %61 = arith.subf %57, %60 : vector<8x8x8xf32>
    %62 = math.exp %61 : vector<8x8x8xf32>
    %cst_10 = arith.constant dense<0.000000e+00> : vector<8x8xf32>
    %63 = vector.multi_reduction <add>, %62, %cst_10 [2] : vector<8x8x8xf32> to vector<8x8xf32>
    %64 = vector.shape_cast %63 : vector<8x8xf32> to vector<8x8x1xf32>
    %65 = tpu.reciprocal %64 {approx = true} : vector<8x8x1xf32> -> vector<8x8x1xf32>
    %66 = vector.broadcast %65 : vector<8x8x1xf32> to vector<8x8x8xf32>
    %67 = arith.mulf %62, %66 : vector<8x8x8xf32>
    %68 = arith.truncf %67 : vector<8x8x8xf32> to vector<8x8x8xbf16>
    "tpu.trace_start"() <{level = 10 : i32, message = "gqk,gke->gqe"}> : () -> ()
    %cst_11 = arith.constant dense<0.000000e+00> : vector<8x8x8xf32>
    %69 = tpu.matmul %68, %56, %cst_11 {dimension_numbers = #tpu.dot_dimension_numbers<[2], [1], [1], [2], [0, 0, 0, 1, 1, 2], [0], [0]>} : vector<8x8x8xbf16>, vector<8x8x8xbf16>, vector<8x8x8xf32> -> vector<8x8x8xf32>
    "tpu.trace_stop"() : () -> ()
    %70 = vector.shape_cast %69 : vector<8x8x8xf32> to vector<4x2x8x8xf32>
    %71 = vector.extract_strided_slice %70 {offsets = [0, 0, 0, 0], sizes = [1, 2, 8, 8], strides = [1, 1, 1, 1]} : vector<4x2x8x8xf32> to vector<1x2x8x8xf32>
    %72 = vector.shape_cast %71 : vector<1x2x8x8xf32> to vector<2x8x8xf32>
    %73 = vector.shape_cast %72 : vector<2x8x8xf32> to vector<16x8xf32>
    %74 = vector.extract_strided_slice %70 {offsets = [1, 0, 0, 0], sizes = [1, 2, 8, 8], strides = [1, 1, 1, 1]} : vector<4x2x8x8xf32> to vector<1x2x8x8xf32>
    %75 = vector.shape_cast %74 : vector<1x2x8x8xf32> to vector<2x8x8xf32>
    %76 = vector.shape_cast %75 : vector<2x8x8xf32> to vector<16x8xf32>
    %77 = vector.extract_strided_slice %70 {offsets = [2, 0, 0, 0], sizes = [1, 2, 8, 8], strides = [1, 1, 1, 1]} : vector<4x2x8x8xf32> to vector<1x2x8x8xf32>
    %78 = vector.shape_cast %77 : vector<1x2x8x8xf32> to vector<2x8x8xf32>
    %79 = vector.shape_cast %78 : vector<2x8x8xf32> to vector<16x8xf32>
    %80 = vector.extract_strided_slice %70 {offsets = [3, 0, 0, 0], sizes = [1, 2, 8, 8], strides = [1, 1, 1, 1]} : vector<4x2x8x8xf32> to vector<1x2x8x8xf32>
    %81 = vector.shape_cast %80 : vector<1x2x8x8xf32> to vector<2x8x8xf32>
    %82 = vector.shape_cast %81 : vector<2x8x8xf32> to vector<16x8xf32>
    %83 = tpu.concatenate %73, %76, %79, %82 in 1 : vector<16x8xf32>, vector<16x8xf32>, vector<16x8xf32>, vector<16x8xf32> -> vector<16x32xf32>
    %84 = arith.truncf %83 : vector<16x32xf32> to vector<16x32xbf16>
    %c0_12 = arith.constant 0 : index
    %c0_13 = arith.constant 0 : index
    %c0_14 = arith.constant 0 : index
    %85 = vector.load %arg4[%c0_12, %c0_13, %c0_14] : memref<1x32x32xbf16, #tpu.memory_space<vmem>>, vector<1x32x32xbf16>
    %86 = vector.shape_cast %85 : vector<1x32x32xbf16> to vector<32x32xbf16>
    %cst_15 = arith.constant dense<0.000000e+00> : vector<16x32xf32>
    %87 = tpu.matmul %84, %86, %cst_15 {dimension_numbers = #tpu.dot_dimension_numbers<[1], [0], [0], [1], [0, 0, 1, 1], [], []>} : vector<16x32xbf16>, vector<32x32xbf16>, vector<16x32xf32> -> vector<16x32xf32>
    %c0_16 = arith.constant 0 : index
    %c0_17 = arith.constant 0 : index
    %c0_18 = arith.constant 0 : index
    %88 = vector.load %arg5[%c0_16, %c0_17, %c0_18] : memref<1x1x32xf32, #tpu.memory_space<vmem>>, vector<1x1x32xf32>
    %89 = vector.shape_cast %88 : vector<1x1x32xf32> to vector<1x32xf32>
    %90 = vector.broadcast %89 : vector<1x32xf32> to vector<16x32xf32>
    %91 = arith.addf %87, %90 : vector<16x32xf32>
    %92 = arith.addf %3, %91 : vector<16x32xf32>
    %c0_19 = arith.constant 0 : index
    %c0_20 = arith.constant 0 : index
    %c0_21 = arith.constant 0 : index
    %93 = vector.load %arg6[%c0_19, %c0_20, %c0_21] : memref<1x1x32xf32, #tpu.memory_space<vmem>>, vector<1x1x32xf32>
    %94 = vector.shape_cast %93 : vector<1x1x32xf32> to vector<1x32xf32>
    %c0_22 = arith.constant 0 : index
    %c0_23 = arith.constant 0 : index
    %c0_24 = arith.constant 0 : index
    %95 = vector.load %arg7[%c0_22, %c0_23, %c0_24] : memref<1x1x32xf32, #tpu.memory_space<vmem>>, vector<1x1x32xf32>
    %96 = vector.shape_cast %95 : vector<1x1x32xf32> to vector<1x32xf32>
    %cst_25 = arith.constant dense<0.000000e+00> : vector<16xf32>
    %97 = vector.multi_reduction <add>, %92, %cst_25 [1] : vector<16x32xf32> to vector<16xf32>
    %98 = vector.shape_cast %97 : vector<16xf32> to vector<16x1xf32>
    %cst_26 = arith.constant 3.200000e+01 : f32
    %99 = vector.broadcast %cst_26 : f32 to vector<16x1xf32>
    %100 = arith.divf %98, %99 : vector<16x1xf32>
    %101 = vector.broadcast %100 : vector<16x1xf32> to vector<16x32xf32>
    %102 = arith.subf %92, %101 : vector<16x32xf32>
    %103 = arith.mulf %102, %102 : vector<16x32xf32>
    %cst_27 = arith.constant dense<0.000000e+00> : vector<16xf32>
    %104 = vector.multi_reduction <add>, %103, %cst_27 [1] : vector<16x32xf32> to vector<16xf32>
    %105 = vector.shape_cast %104 : vector<16xf32> to vector<16x1xf32>
    %cst_28 = arith.constant 3.200000e+01 : f32
    %106 = vector.broadcast %cst_28 : f32 to vector<16x1xf32>
    %107 = arith.divf %105, %106 : vector<16x1xf32>
    %cst_29 = arith.constant 9.99999974E-6 : f32
    %108 = vector.broadcast %cst_29 : f32 to vector<16x1xf32>
    %109 = arith.addf %107, %108 : vector<16x1xf32>
    %110 = math.rsqrt %109 : vector<16x1xf32>
    %111 = vector.broadcast %110 : vector<16x1xf32> to vector<16x32xf32>
    %112 = arith.mulf %102, %111 : vector<16x32xf32>
    %113 = vector.broadcast %94 : vector<1x32xf32> to vector<16x32xf32>
    %114 = arith.mulf %112, %113 : vector<16x32xf32>
    %115 = vector.broadcast %96 : vector<1x32xf32> to vector<16x32xf32>
    %116 = arith.addf %114, %115 : vector<16x32xf32>
    %117 = arith.truncf %116 : vector<16x32xf32> to vector<16x32xbf16>
    %c0_30 = arith.constant 0 : index
    %c0_31 = arith.constant 0 : index
    %c0_32 = arith.constant 0 : index
    %118 = vector.load %arg10[%c0_30, %c0_31, %c0_32] : memref<1x32x64xbf16, #tpu.memory_space<vmem>>, vector<1x32x64xbf16>
    %119 = vector.shape_cast %118 : vector<1x32x64xbf16> to vector<32x64xbf16>
    %cst_33 = arith.constant dense<0.000000e+00> : vector<16x64xf32>
    %120 = tpu.matmul %117, %119, %cst_33 {dimension_numbers = #tpu.dot_dimension_numbers<[1], [0], [0], [1], [0, 0, 1, 1], [], []>} : vector<16x32xbf16>, vector<32x64xbf16>, vector<16x64xf32> -> vector<16x64xf32>
    %c0_34 = arith.constant 0 : index
    %c0_35 = arith.constant 0 : index
    %c0_36 = arith.constant 0 : index
    %121 = vector.load %arg11[%c0_34, %c0_35, %c0_36] : memref<1x1x64xf32, #tpu.memory_space<vmem>>, vector<1x1x64xf32>
    %122 = vector.shape_cast %121 : vector<1x1x64xf32> to vector<1x64xf32>
    %123 = vector.broadcast %122 : vector<1x64xf32> to vector<16x64xf32>
    %124 = arith.addf %120, %123 : vector<16x64xf32>
    %cst_37 = arith.constant 0.000000e+00 : f32
    %125 = vector.broadcast %cst_37 : f32 to vector<16x64xf32>
    %126 = arith.maximumf %124, %125 : vector<16x64xf32>
    %127 = arith.truncf %126 : vector<16x64xf32> to vector<16x64xbf16>
    %c0_38 = arith.constant 0 : index
    %c0_39 = arith.constant 0 : index
    %c0_40 = arith.constant 0 : index
    %128 = vector.load %arg12[%c0_38, %c0_39, %c0_40] : memref<1x64x32xbf16, #tpu.memory_space<vmem>>, vector<1x64x32xbf16>
    %129 = vector.shape_cast %128 : vector<1x64x32xbf16> to vector<64x32xbf16>
    %cst_41 = arith.constant dense<0.000000e+00> : vector<16x32xf32>
    %130 = tpu.matmul %127, %129, %cst_41 {dimension_numbers = #tpu.dot_dimension_numbers<[1], [0], [0], [1], [0, 0, 1, 1], [], []>} : vector<16x64xbf16>, vector<64x32xbf16>, vector<16x32xf32> -> vector<16x32xf32>
    %c0_42 = arith.constant 0 : index
    %c0_43 = arith.constant 0 : index
    %c0_44 = arith.constant 0 : index
    %131 = vector.load %arg13[%c0_42, %c0_43, %c0_44] : memref<1x1x32xf32, #tpu.memory_space<vmem>>, vector<1x1x32xf32>
    %132 = vector.shape_cast %131 : vector<1x1x32xf32> to vector<1x32xf32>
    %133 = vector.broadcast %132 : vector<1x32xf32> to vector<16x32xf32>
    %134 = arith.addf %130, %133 : vector<16x32xf32>
    %135 = arith.addf %116, %134 : vector<16x32xf32>
    %c0_45 = arith.constant 0 : index
    %c0_46 = arith.constant 0 : index
    %c0_47 = arith.constant 0 : index
    %136 = vector.load %arg8[%c0_45, %c0_46, %c0_47] : memref<1x1x32xf32, #tpu.memory_space<vmem>>, vector<1x1x32xf32>
    %137 = vector.shape_cast %136 : vector<1x1x32xf32> to vector<1x32xf32>
    %c0_48 = arith.constant 0 : index
    %c0_49 = arith.constant 0 : index
    %c0_50 = arith.constant 0 : index
    %138 = vector.load %arg9[%c0_48, %c0_49, %c0_50] : memref<1x1x32xf32, #tpu.memory_space<vmem>>, vector<1x1x32xf32>
    %139 = vector.shape_cast %138 : vector<1x1x32xf32> to vector<1x32xf32>
    %cst_51 = arith.constant dense<0.000000e+00> : vector<16xf32>
    %140 = vector.multi_reduction <add>, %135, %cst_51 [1] : vector<16x32xf32> to vector<16xf32>
    %141 = vector.shape_cast %140 : vector<16xf32> to vector<16x1xf32>
    %cst_52 = arith.constant 3.200000e+01 : f32
    %142 = vector.broadcast %cst_52 : f32 to vector<16x1xf32>
    %143 = arith.divf %141, %142 : vector<16x1xf32>
    %144 = vector.broadcast %143 : vector<16x1xf32> to vector<16x32xf32>
    %145 = arith.subf %135, %144 : vector<16x32xf32>
    %146 = arith.mulf %145, %145 : vector<16x32xf32>
    %cst_53 = arith.constant dense<0.000000e+00> : vector<16xf32>
    %147 = vector.multi_reduction <add>, %146, %cst_53 [1] : vector<16x32xf32> to vector<16xf32>
    %148 = vector.shape_cast %147 : vector<16xf32> to vector<16x1xf32>
    %cst_54 = arith.constant 3.200000e+01 : f32
    %149 = vector.broadcast %cst_54 : f32 to vector<16x1xf32>
    %150 = arith.divf %148, %149 : vector<16x1xf32>
    %cst_55 = arith.constant 9.99999974E-6 : f32
    %151 = vector.broadcast %cst_55 : f32 to vector<16x1xf32>
    %152 = arith.addf %150, %151 : vector<16x1xf32>
    %153 = math.rsqrt %152 : vector<16x1xf32>
    %154 = vector.broadcast %153 : vector<16x1xf32> to vector<16x32xf32>
    %155 = arith.mulf %145, %154 : vector<16x32xf32>
    %156 = vector.broadcast %137 : vector<1x32xf32> to vector<16x32xf32>
    %157 = arith.mulf %155, %156 : vector<16x32xf32>
    %158 = vector.broadcast %139 : vector<1x32xf32> to vector<16x32xf32>
    %159 = arith.addf %157, %158 : vector<16x32xf32>
    %c0_56 = arith.constant 0 : index
    %c0_57 = arith.constant 0 : index
    %160 = vector.load %arg17[%c0_56, %c0_57] : memref<16x32xf32, #tpu.memory_space<vmem>>, vector<16x32xf32>
    tpu.vector_store %arg17[%c0_56, %c0_57], %159 {strides = array<i32>} : memref<16x32xf32, #tpu.memory_space<vmem>>, vector<16x32xf32>,
    %c1_i32 = arith.constant 1 : i32
    %161 = arith.cmpi eq, %arg0, %c1_i32 : i32
    %162 = arith.extui %161 : i1 to i32
    %c0_i32_58 = arith.constant 0 : i32
    %163 = arith.cmpi ne, %162, %c0_i32_58 : i32
    scf.if %163 {
      %c0_59 = arith.constant 0 : index
      %c0_60 = arith.constant 0 : index
      %164 = vector.load %arg14[%c0_59, %c0_60] : memref<1x32xf32, #tpu.memory_space<vmem>>, vector<1x32xf32>
      %c0_61 = arith.constant 0 : index
      %c0_62 = arith.constant 0 : index
      %165 = vector.load %arg15[%c0_61, %c0_62] : memref<1x32xf32, #tpu.memory_space<vmem>>, vector<1x32xf32>
      %cst_63 = arith.constant dense<0.000000e+00> : vector<16xf32>
      %166 = vector.multi_reduction <add>, %159, %cst_63 [1] : vector<16x32xf32> to vector<16xf32>
      %167 = vector.shape_cast %166 : vector<16xf32> to vector<16x1xf32>
      %cst_64 = arith.constant 3.200000e+01 : f32
      %168 = vector.broadcast %cst_64 : f32 to vector<16x1xf32>
      %169 = arith.divf %167, %168 : vector<16x1xf32>
      %170 = vector.broadcast %169 : vector<16x1xf32> to vector<16x32xf32>
      %171 = arith.subf %159, %170 : vector<16x32xf32>
      %172 = arith.mulf %171, %171 : vector<16x32xf32>
      %cst_65 = arith.constant dense<0.000000e+00> : vector<16xf32>
      %173 = vector.multi_reduction <add>, %172, %cst_65 [1] : vector<16x32xf32> to vector<16xf32>
      %174 = vector.shape_cast %173 : vector<16xf32> to vector<16x1xf32>
      %cst_66 = arith.constant 3.200000e+01 : f32
      %175 = vector.broadcast %cst_66 : f32 to vector<16x1xf32>
      %176 = arith.divf %174, %175 : vector<16x1xf32>
      %cst_67 = arith.constant 9.99999974E-6 : f32
      %177 = vector.broadcast %cst_67 : f32 to vector<16x1xf32>
      %178 = arith.addf %176, %177 : vector<16x1xf32>
      %179 = math.rsqrt %178 : vector<16x1xf32>
      %180 = vector.broadcast %179 : vector<16x1xf32> to vector<16x32xf32>
      %181 = arith.mulf %171, %180 : vector<16x32xf32>
      %182 = vector.broadcast %164 : vector<1x32xf32> to vector<16x32xf32>
      %183 = arith.mulf %181, %182 : vector<16x32xf32>
      %184 = vector.broadcast %165 : vector<1x32xf32> to vector<16x32xf32>
      %185 = arith.addf %183, %184 : vector<16x32xf32>
      %186 = vector.shape_cast %185 : vector<16x32xf32> to vector<2x8x32xf32>
      %187 = tpu.transpose %186, [1, 0, 2] : vector<2x8x32xf32> -> vector<8x2x32xf32>
      %c0_68 = arith.constant 0 : index
      %c0_69 = arith.constant 0 : index
      %c0_70 = arith.constant 0 : index
      %188 = vector.load %arg16[%c0_68, %c0_69, %c0_70] : memref<8x2x32xf32, #tpu.memory_space<vmem>>, vector<8x2x32xf32>
      tpu.vector_store %arg16[%c0_68, %c0_69, %c0_70], %187 {strides = array<i32>} : memref<8x2x32xf32, #tpu.memory_space<vmem>>, vector<8x2x32xf32>,
    } else {
    }
    return
  }
  func.func @transform_0(%arg0: i32) -> (i32, i32, i32) {
    %c0_i32 = arith.constant 0 : i32
    %c0_i32_0 = arith.constant 0 : i32
    %c0_i32_1 = arith.constant 0 : i32
    %c0_i32_2 = arith.constant 0 : i32
    return %c0_i32, %c0_i32_0, %c0_i32_1 : i32, i32, i32
  }
  func.func @transform_1(%arg0: i32) -> (i32, i32, i32) {
    %c0_i32 = arith.constant 0 : i32
    %c0_i32_0 = arith.constant 0 : i32
    %c0_i32_1 = arith.constant 0 : i32
    return %arg0, %c0_i32, %c0_i32_0 : i32, i32, i32
  }
  func.func @transform_2(%arg0: i32) -> (i32, i32, i32) {
    %c0_i32 = arith.constant 0 : i32
    %c0_i32_0 = arith.constant 0 : i32
    %c0_i32_1 = arith.constant 0 : i32
    return %arg0, %c0_i32, %c0_i32_0 : i32, i32, i32
  }
  func.func @transform_3(%arg0: i32) -> (i32, i32, i32) {
    %c0_i32 = arith.constant 0 : i32
    %c0_i32_0 = arith.constant 0 : i32
    %c0_i32_1 = arith.constant 0 : i32
    return %arg0, %c0_i32, %c0_i32_0 : i32, i32, i32
  }
  func.func @transform_4(%arg0: i32) -> (i32, i32, i32) {
    %c0_i32 = arith.constant 0 : i32
    %c0_i32_0 = arith.constant 0 : i32
    %c0_i32_1 = arith.constant 0 : i32
    return %arg0, %c0_i32, %c0_i32_0 : i32, i32, i32
  }
  func.func @transform_5(%arg0: i32) -> (i32, i32, i32) {
    %c0_i32 = arith.constant 0 : i32
    %c0_i32_0 = arith.constant 0 : i32
    %c0_i32_1 = arith.constant 0 : i32
    return %arg0, %c0_i32, %c0_i32_0 : i32, i32, i32
  }
  func.func @transform_6(%arg0: i32) -> (i32, i32, i32) {
    %c0_i32 = arith.constant 0 : i32
    %c0_i32_0 = arith.constant 0 : i32
    %c0_i32_1 = arith.constant 0 : i32
    return %arg0, %c0_i32, %c0_i32_0 : i32, i32, i32
  }
  func.func @transform_7(%arg0: i32) -> (i32, i32, i32) {
    %c0_i32 = arith.constant 0 : i32
    %c0_i32_0 = arith.constant 0 : i32
    %c0_i32_1 = arith.constant 0 : i32
    return %arg0, %c0_i32, %c0_i32_0 : i32, i32, i32
  }
  func.func @transform_8(%arg0: i32) -> (i32, i32, i32) {
    %c0_i32 = arith.constant 0 : i32
    %c0_i32_0 = arith.constant 0 : i32
    %c0_i32_1 = arith.constant 0 : i32
    return %arg0, %c0_i32, %c0_i32_0 : i32, i32, i32
  }
  func.func @transform_9(%arg0: i32) -> (i32, i32, i32) {
    %c0_i32 = arith.constant 0 : i32
    %c0_i32_0 = arith.constant 0 : i32
    %c0_i32_1 = arith.constant 0 : i32
    return %arg0, %c0_i32, %c0_i32_0 : i32, i32, i32
  }
  func.func @transform_10(%arg0: i32) -> (i32, i32, i32) {
    %c0_i32 = arith.constant 0 : i32
    %c0_i32_0 = arith.constant 0 : i32
    %c0_i32_1 = arith.constant 0 : i32
    return %arg0, %c0_i32, %c0_i32_0 : i32, i32, i32
  }
  func.func @transform_11(%arg0: i32) -> (i32, i32, i32) {
    %c0_i32 = arith.constant 0 : i32
    %c0_i32_0 = arith.constant 0 : i32
    %c0_i32_1 = arith.constant 0 : i32
    return %arg0, %c0_i32, %c0_i32_0 : i32, i32, i32
  }
  func.func @transform_12(%arg0: i32) -> (i32, i32, i32) {
    %c0_i32 = arith.constant 0 : i32
    %c0_i32_0 = arith.constant 0 : i32
    %c0_i32_1 = arith.constant 0 : i32
    return %arg0, %c0_i32, %c0_i32_0 : i32, i32, i32
  }
  func.func @transform_13(%arg0: i32) -> (i32, i32) {
    %c0_i32 = arith.constant 0 : i32
    %c0_i32_0 = arith.constant 0 : i32
    %c0_i32_1 = arith.constant 0 : i32
    return %c0_i32, %c0_i32_0 : i32, i32
  }
  func.func @transform_14(%arg0: i32) -> (i32, i32) {
    %c0_i32 = arith.constant 0 : i32
    %c0_i32_0 = arith.constant 0 : i32
    %c0_i32_1 = arith.constant 0 : i32
    return %c0_i32, %c0_i32_0 : i32, i32
  }
  func.func @transform_15(%arg0: i32) -> (i32, i32, i32) {
    %c0_i32 = arith.constant 0 : i32
    %c0_i32_0 = arith.constant 0 : i32
    %c0_i32_1 = arith.constant 0 : i32
    %c0_i32_2 = arith.constant 0 : i32
    return %c0_i32, %c0_i32_0, %c0_i32_1 : i32, i32, i32
  }
}

</mosaic_0001>

<llo_original>
// kernel: entity_context_encoder_forward.1
$region0: #{entity_context_encoder_forward.1}
  #allocation0 [shape = 'u32[]', space=smem, size = 0x4, offset = 0x4, fixed_abs, tag = 'smem constant byte address 0x4 - core index']
  #allocation1 [shape = 'u32[144,128]{1,0:T(1,128)}', space=vmem, size = 0x12000, scoped, tag = 'internal scratch']
  #allocation2 [shape = 'f32[16,32]{1,0:T(8,128)}', space=vmem, size = 0x2000, scoped, tag = 'scratch operand']
  %s0 = inlined_call_operand.hbm [shape: f32[8,2,32], index: 0, kind: input, shape index: {}]
  %s1 = inlined_call_operand.vmem [shape: bf16[2,32,96], index: 1, kind: input, shape index: {}]
  %s2 = inlined_call_operand.vmem [shape: f32[2,1,96], index: 2, kind: input, shape index: {}]
  %s3 = inlined_call_operand.vmem [shape: bf16[2,32,32], index: 3, kind: input, shape index: {}]
  %s4 = inlined_call_operand.vmem [shape: f32[2,1,32], index: 4, kind: input, shape index: {}]
  %s5 = inlined_call_operand.vmem [shape: f32[2,1,32], index: 5, kind: input, shape index: {}]
  %s6 = inlined_call_operand.vmem [shape: f32[2,1,32], index: 6, kind: input, shape index: {}]
  %s7 = inlined_call_operand.vmem [shape: f32[2,1,32], index: 7, kind: input, shape index: {}]
  %s8 = inlined_call_operand.vmem [shape: f32[2,1,32], index: 8, kind: input, shape index: {}]
  %s9 = inlined_call_operand.vmem [shape: bf16[2,32,64], index: 9, kind: input, shape index: {}]
  %s10 = inlined_call_operand.hbm [shape: f32[2,1,64], index: 10, kind: input, shape index: {}]
  %s11 = inlined_call_operand.vmem [shape: bf16[2,64,32], index: 11, kind: input, shape index: {}]
  %s12 = inlined_call_operand.hbm [shape: f32[2,1,32], index: 12, kind: input, shape index: {}]
  %s13 = inlined_call_operand.vmem [shape: f32[1,32], index: 13, kind: input, shape index: {}]
  %s14 = inlined_call_operand.hbm [shape: f32[1,32], index: 14, kind: input, shape index: {}]
  %s15 = inlined_call_operand.hbm [shape: f32[8,2,32], index: 15, kind: output, shape index: {}]
  %s16 = sld [smem:[#allocation0]]
  $region117: #{entity_context_encoder_forward.1} parent=0
    _
  %s18 = ssub.s32 1, %s16
  %s19 = scalar_select 0, %s18, %s16
  $region1: #{entity_context_encoder_forward.1} parent=0
    #allocation3 [shape = 'u8[8192]{0}', space=vmem, size = 0x2000, scoped, tag = 'input window, operand 0, single buffered']
    #allocation4 [shape = 's32[2]{0}', space=sflag, size = 0x8, scoped, tag = 'scoped memory for entity_context_encoder_forward.1']
    #allocation5 [shape = 's32[2]{0}', space=sflag, size = 0x8, scoped, tag = 'scoped memory for entity_context_encoder_forward.1']
    #allocation6 [shape = 'u8[1024]{0}', space=vmem, size = 0x400, scoped, tag = 'input window, operand 10']
    #allocation7 [shape = 's32[2]{0}', space=sflag, size = 0x8, scoped, tag = 'scoped memory for entity_context_encoder_forward.1']
    #allocation8 [shape = 'u8[1024]{0}', space=vmem, size = 0x400, scoped, tag = 'input window, operand 12']
    #allocation9 [shape = 'u8[512]{0}', space=vmem, size = 0x400, scoped, tag = 'input window, operand 14, single buffered']
    #allocation10 [shape = 's32[1]{0}', space=sflag, size = 0x4, scoped, tag = 'scoped memory for entity_context_encoder_forward.1']
    #allocation11 [shape = 'u8[8192]{0}', space=vmem, size = 0x2000, scoped, tag = 'output window, operand 0, single buffered']
    %20 = vsyncpa [#allocation4], 0
    %21 = vsyncpa [#allocation7], 0
    %s22 = scalar_lea.sflag [#allocation7], 1
    %23 = vsyncpa %s22, 0
    %24 = vsyncpa [#allocation10], 0
    %25 = vsyncpa [#allocation5], 0
    loop: start=0, step=1, limit=4
    $region2: #{entity_context_encoder_forward.1} parent=1 // loop_pre_header
      _
    $region3: #{entity_context_encoder_forward.1} parent=1 // loop_header
      %s27 = sphi 0, %s31
      %p28 = scmp.ge.s32.totalorder %s27, 4
      %s35 = sphi 0, %s35
      %s37 = sphi 0, %s35
      %s38 = sphi 0, %s37
      %s52 = sphi 0, %s38
      %s58 = sphi 0, %s60
      %s61 = sphi 0, %s58
      %s62 = sphi 0, %s61
      %s78 = sphi 0, %s62
      %s84 = sphi 0, %s86
      %s87 = sphi 0, %s84
      %s88 = sphi 0, %s87
      %s104 = sphi 0, %s88
      %s110 = sphi 0, %s112
      %s113 = sphi 0, %s110
      %s114 = sphi 0, %s113
      %s130 = sphi 0, %s114
      %s136 = sphi 0, %s138
      %s139 = sphi 0, %s136
      %s140 = sphi 0, %s139
      %s156 = sphi 0, %s140
      %s162 = sphi 0, %s164
      %s165 = sphi 0, %s162
      %s166 = sphi 0, %s165
      %s182 = sphi 0, %s166
      %s188 = sphi 0, %s190
      %s191 = sphi 0, %s188
      %s192 = sphi 0, %s191
      %s208 = sphi 0, %s192
      %s214 = sphi 0, %s216
      %s217 = sphi 0, %s214
      %s218 = sphi 0, %s217
      %s234 = sphi 0, %s218
      %s240 = sphi 0, %s242
      %s243 = sphi 0, %s240
      %s244 = sphi 0, %s243
      %s260 = sphi 0, %s244
      %s266 = sphi 0, %s268
      %s269 = sphi 0, %s266
      %s270 = sphi 0, %s269
      %s286 = sphi 0, %s270
      %s292 = sphi 0, %s294
      %s295 = sphi 0, %s292
      %s296 = sphi 0, %s295
      %s312 = sphi 0, %s296
      %s318 = sphi 0, %s320
      %s321 = sphi 0, %s318
      %s322 = sphi 0, %s321
      %s338 = sphi 0, %s322
      %s344 = sphi 0, %s346
      %s347 = sphi 0, %s344
      %s348 = sphi 0, %s347
      %s364 = sphi 0, %s348
      %s368 = sphi 0, %s368
      %s370 = sphi 0, %s368
      %s371 = sphi 0, %s370
      %s385 = sphi 0, %s371
      %s389 = sphi 0, %s389
      %s391 = sphi 0, %s389
      %s392 = sphi 0, %s391
      %s406 = sphi 0, %s392
      %s410 = sphi 0, %s410
      %s412 = sphi 0, %s410
      %s413 = sphi 0, %s412
      %s427 = sphi 0, %s413
    $region4: #{entity_context_encoder_forward.1} parent=1 // loop_header_branch
      %30 = sbr.rel (%p28) target = $region8
    $region5: #{entity_context_encoder_forward.1} parent=1 // loop_body
      %s32 = ssub.s32 %s27, 1
      %s33 = ssub.s32 %s27, 2
      %s34 = sadd.s32 %s27, 1
      %s36 = sadd.s32 %s35, 1
      %p39 = scmp.eq.s32.totalorder %s27, 1
      %p40 = scmp.ne.s32.totalorder %s35, %s37
      %p41 = scmp.eq.s32.totalorder %s27, 0
      %p42 = por %p40, %p41
      %p43 = scmp.ne.s32.totalorder %s35, %s37
      %p44 = scmp.eq.s32.totalorder %s32, 1
      %p45 = por %p43, %p44
      %p46 = scmp.ne.s32.totalorder %s37, %s38
      %p47 = scmp.eq.s32.totalorder %s32, 0
      %p48 = por %p46, %p47
      %p49 = scmp.ne.s32.totalorder %s37, %s38
      %p50 = scmp.eq.s32.totalorder %s33, 1
      %p51 = por %p49, %p50
      %p53 = scmp.ne.s32.totalorder %s38, %s52
      %p54 = scmp.eq.s32.totalorder %s33, 0
      %p55 = por %p53, %p54
      %s56 = ssub.s32 %s27, %s34
      %p57 = scmp.eq.s32.totalorder %s56, 0
      %s59 = sadd.s32 %s58, 1
      %s60 = scalar_select %p57, %s58, %s59
      %p63 = pneg %p57
      %p64 = scmp.eq.s32.totalorder %s27, 1
      %p65 = por %p63, %p64
      %p66 = scmp.ne.s32.totalorder %s58, %s61
      %p67 = scmp.eq.s32.totalorder %s27, 0
      %p68 = por %p66, %p67
      %p69 = scmp.ne.s32.totalorder %s58, %s61
      %p70 = scmp.eq.s32.totalorder %s32, 1
      %p71 = por %p69, %p70
      %p72 = scmp.ne.s32.totalorder %s61, %s62
      %p73 = scmp.eq.s32.totalorder %s32, 0
      %p74 = por %p72, %p73
      %p75 = scmp.ne.s32.totalorder %s61, %s62
      %p76 = scmp.eq.s32.totalorder %s33, 1
      %p77 = por %p75, %p76
      %p79 = scmp.ne.s32.totalorder %s62, %s78
      %p80 = scmp.eq.s32.totalorder %s33, 0
      %p81 = por %p79, %p80
      %s82 = ssub.s32 %s27, %s34
      %p83 = scmp.eq.s32.totalorder %s82, 0
      %s85 = sadd.s32 %s84, 1
      %s86 = scalar_select %p83, %s84, %s85
      %p89 = pneg %p83
      %p90 = scmp.eq.s32.totalorder %s27, 1
      %p91 = por %p89, %p90
      %p92 = scmp.ne.s32.totalorder %s84, %s87
      %p93 = scmp.eq.s32.totalorder %s27, 0
      %p94 = por %p92, %p93
      %p95 = scmp.ne.s32.totalorder %s84, %s87
      %p96 = scmp.eq.s32.totalorder %s32, 1
      %p97 = por %p95, %p96
      %p98 = scmp.ne.s32.totalorder %s87, %s88
      %p99 = scmp.eq.s32.totalorder %s32, 0
      %p100 = por %p98, %p99
      %p101 = scmp.ne.s32.totalorder %s87, %s88
      %p102 = scmp.eq.s32.totalorder %s33, 1
      %p103 = por %p101, %p102
      %p105 = scmp.ne.s32.totalorder %s88, %s104
      %p106 = scmp.eq.s32.totalorder %s33, 0
      %p107 = por %p105, %p106
      %s108 = ssub.s32 %s27, %s34
      %p109 = scmp.eq.s32.totalorder %s108, 0
      %s111 = sadd.s32 %s110, 1
      %s112 = scalar_select %p109, %s110, %s111
      %p115 = pneg %p109
      %p116 = scmp.eq.s32.totalorder %s27, 1
      %p117 = por %p115, %p116
      %p118 = scmp.ne.s32.totalorder %s110, %s113
      %p119 = scmp.eq.s32.totalorder %s27, 0
      %p120 = por %p118, %p119
      %p121 = scmp.ne.s32.totalorder %s110, %s113
      %p122 = scmp.eq.s32.totalorder %s32, 1
      %p123 = por %p121, %p122
      %p124 = scmp.ne.s32.totalorder %s113, %s114
      %p125 = scmp.eq.s32.totalorder %s32, 0
      %p126 = por %p124, %p125
      %p127 = scmp.ne.s32.totalorder %s113, %s114
      %p128 = scmp.eq.s32.totalorder %s33, 1
      %p129 = por %p127, %p128
      %p131 = scmp.ne.s32.totalorder %s114, %s130
      %p132 = scmp.eq.s32.totalorder %s33, 0
      %p133 = por %p131, %p132
      %s134 = ssub.s32 %s27, %s34
      %p135 = scmp.eq.s32.totalorder %s134, 0
      %s137 = sadd.s32 %s136, 1
      %s138 = scalar_select %p135, %s136, %s137
      %p141 = pneg %p135
      %p142 = scmp.eq.s32.totalorder %s27, 1
      %p143 = por %p141, %p142
      %p144 = scmp.ne.s32.totalorder %s136, %s139
      %p145 = scmp.eq.s32.totalorder %s27, 0
      %p146 = por %p144, %p145
      %p147 = scmp.ne.s32.totalorder %s136, %s139
      %p148 = scmp.eq.s32.totalorder %s32, 1
      %p149 = por %p147, %p148
      %p150 = scmp.ne.s32.totalorder %s139, %s140
      %p151 = scmp.eq.s32.totalorder %s32, 0
      %p152 = por %p150, %p151
      %p153 = scmp.ne.s32.totalorder %s139, %s140
      %p154 = scmp.eq.s32.totalorder %s33, 1
      %p155 = por %p153, %p154
      %p157 = scmp.ne.s32.totalorder %s140, %s156
      %p158 = scmp.eq.s32.totalorder %s33, 0
      %p159 = por %p157, %p158
      %s160 = ssub.s32 %s27, %s34
      %p161 = scmp.eq.s32.totalorder %s160, 0
      %s163 = sadd.s32 %s162, 1
      %s164 = scalar_select %p161, %s162, %s163
      %p167 = pneg %p161
      %p168 = scmp.eq.s32.totalorder %s27, 1
      %p169 = por %p167, %p168
      %p170 = scmp.ne.s32.totalorder %s162, %s165
      %p171 = scmp.eq.s32.totalorder %s27, 0
      %p172 = por %p170, %p171
      %p173 = scmp.ne.s32.totalorder %s162, %s165
      %p174 = scmp.eq.s32.totalorder %s32, 1
      %p175 = por %p173, %p174
      %p176 = scmp.ne.s32.totalorder %s165, %s166
      %p177 = scmp.eq.s32.totalorder %s32, 0
      %p178 = por %p176, %p177
      %p179 = scmp.ne.s32.totalorder %s165, %s166
      %p180 = scmp.eq.s32.totalorder %s33, 1
      %p181 = por %p179, %p180
      %p183 = scmp.ne.s32.totalorder %s166, %s182
      %p184 = scmp.eq.s32.totalorder %s33, 0
      %p185 = por %p183, %p184
      %s186 = ssub.s32 %s27, %s34
      %p187 = scmp.eq.s32.totalorder %s186, 0
      %s189 = sadd.s32 %s188, 1
      %s190 = scalar_select %p187, %s188, %s189
      %p193 = pneg %p187
      %p194 = scmp.eq.s32.totalorder %s27, 1
      %p195 = por %p193, %p194
      %p196 = scmp.ne.s32.totalorder %s188, %s191
      %p197 = scmp.eq.s32.totalorder %s27, 0
      %p198 = por %p196, %p197
      %p199 = scmp.ne.s32.totalorder %s188, %s191
      %p200 = scmp.eq.s32.totalorder %s32, 1
      %p201 = por %p199, %p200
      %p202 = scmp.ne.s32.totalorder %s191, %s192
      %p203 = scmp.eq.s32.totalorder %s32, 0
      %p204 = por %p202, %p203
      %p205 = scmp.ne.s32.totalorder %s191, %s192
      %p206 = scmp.eq.s32.totalorder %s33, 1
      %p207 = por %p205, %p206
      %p209 = scmp.ne.s32.totalorder %s192, %s208
      %p210 = scmp.eq.s32.totalorder %s33, 0
      %p211 = por %p209, %p210
      %s212 = ssub.s32 %s27, %s34
      %p213 = scmp.eq.s32.totalorder %s212, 0
      %s215 = sadd.s32 %s214, 1
      %s216 = scalar_select %p213, %s214, %s215
      %p219 = pneg %p213
      %p220 = scmp.eq.s32.totalorder %s27, 1
      %p221 = por %p219, %p220
      %p222 = scmp.ne.s32.totalorder %s214, %s217
      %p223 = scmp.eq.s32.totalorder %s27, 0
      %p224 = por %p222, %p223
      %p225 = scmp.ne.s32.totalorder %s214, %s217
      %p226 = scmp.eq.s32.totalorder %s32, 1
      %p227 = por %p225, %p226
      %p228 = scmp.ne.s32.totalorder %s217, %s218
      %p229 = scmp.eq.s32.totalorder %s32, 0
      %p230 = por %p228, %p229
      %p231 = scmp.ne.s32.totalorder %s217, %s218
      %p232 = scmp.eq.s32.totalorder %s33, 1
      %p233 = por %p231, %p232
      %p235 = scmp.ne.s32.totalorder %s218, %s234
      %p236 = scmp.eq.s32.totalorder %s33, 0
      %p237 = por %p235, %p236
      %s238 = ssub.s32 %s27, %s34
      %p239 = scmp.eq.s32.totalorder %s238, 0
      %s241 = sadd.s32 %s240, 1
      %s242 = scalar_select %p239, %s240, %s241
      %p245 = pneg %p239
      %p246 = scmp.eq.s32.totalorder %s27, 1
      %p247 = por %p245, %p246
      %p248 = scmp.ne.s32.totalorder %s240, %s243
      %p249 = scmp.eq.s32.totalorder %s27, 0
      %p250 = por %p248, %p249
      %p251 = scmp.ne.s32.totalorder %s240, %s243
      %p252 = scmp.eq.s32.totalorder %s32, 1
      %p253 = por %p251, %p252
      %p254 = scmp.ne.s32.totalorder %s243, %s244
      %p255 = scmp.eq.s32.totalorder %s32, 0
      %p256 = por %p254, %p255
      %p257 = scmp.ne.s32.totalorder %s243, %s244
      %p258 = scmp.eq.s32.totalorder %s33, 1
      %p259 = por %p257, %p258
      %p261 = scmp.ne.s32.totalorder %s244, %s260
      %p262 = scmp.eq.s32.totalorder %s33, 0
      %p263 = por %p261, %p262
      %s264 = ssub.s32 %s27, %s34
      %p265 = scmp.eq.s32.totalorder %s264, 0
      %s267 = sadd.s32 %s266, 1
      %s268 = scalar_select %p265, %s266, %s267
      %p271 = pneg %p265
      %p272 = scmp.eq.s32.totalorder %s27, 1
      %p273 = por %p271, %p272
      %p274 = scmp.ne.s32.totalorder %s266, %s269
      %p275 = scmp.eq.s32.totalorder %s27, 0
      %p276 = por %p274, %p275
      %p277 = scmp.ne.s32.totalorder %s266, %s269
      %p278 = scmp.eq.s32.totalorder %s32, 1
      %p279 = por %p277, %p278
      %p280 = scmp.ne.s32.totalorder %s269, %s270
      %p281 = scmp.eq.s32.totalorder %s32, 0
      %p282 = por %p280, %p281
      %p283 = scmp.ne.s32.totalorder %s269, %s270
      %p284 = scmp.eq.s32.totalorder %s33, 1
      %p285 = por %p283, %p284
      %p287 = scmp.ne.s32.totalorder %s270, %s286
      %p288 = scmp.eq.s32.totalorder %s33, 0
      %p289 = por %p287, %p288
      %s290 = ssub.s32 %s27, %s34
      %p291 = scmp.eq.s32.totalorder %s290, 0
      %s293 = sadd.s32 %s292, 1
      %s294 = scalar_select %p291, %s292, %s293
      %p297 = pneg %p291
      %p298 = scmp.eq.s32.totalorder %s27, 1
      %p299 = por %p297, %p298
      %p300 = scmp.ne.s32.totalorder %s292, %s295
      %p301 = scmp.eq.s32.totalorder %s27, 0
      %p302 = por %p300, %p301
      %p303 = scmp.ne.s32.totalorder %s292, %s295
      %p304 = scmp.eq.s32.totalorder %s32, 1
      %p305 = por %p303, %p304
      %p306 = scmp.ne.s32.totalorder %s295, %s296
      %p307 = scmp.eq.s32.totalorder %s32, 0
      %p308 = por %p306, %p307
      %p309 = scmp.ne.s32.totalorder %s295, %s296
      %p310 = scmp.eq.s32.totalorder %s33, 1
      %p311 = por %p309, %p310
      %p313 = scmp.ne.s32.totalorder %s296, %s312
      %p314 = scmp.eq.s32.totalorder %s33, 0
      %p315 = por %p313, %p314
      %s316 = ssub.s32 %s27, %s34
      %p317 = scmp.eq.s32.totalorder %s316, 0
      %s319 = sadd.s32 %s318, 1
      %s320 = scalar_select %p317, %s318, %s319
      %p323 = pneg %p317
      %p324 = scmp.eq.s32.totalorder %s27, 1
      %p325 = por %p323, %p324
      %p326 = scmp.ne.s32.totalorder %s318, %s321
      %p327 = scmp.eq.s32.totalorder %s27, 0
      %p328 = por %p326, %p327
      %p329 = scmp.ne.s32.totalorder %s318, %s321
      %p330 = scmp.eq.s32.totalorder %s32, 1
      %p331 = por %p329, %p330
      %p332 = scmp.ne.s32.totalorder %s321, %s322
      %p333 = scmp.eq.s32.totalorder %s32, 0
      %p334 = por %p332, %p333
      %p335 = scmp.ne.s32.totalorder %s321, %s322
      %p336 = scmp.eq.s32.totalorder %s33, 1
      %p337 = por %p335, %p336
      %p339 = scmp.ne.s32.totalorder %s322, %s338
      %p340 = scmp.eq.s32.totalorder %s33, 0
      %p341 = por %p339, %p340
      %s342 = ssub.s32 %s27, %s34
      %p343 = scmp.eq.s32.totalorder %s342, 0
      %s345 = sadd.s32 %s344, 1
      %s346 = scalar_select %p343, %s344, %s345
      %p349 = pneg %p343
      %p350 = scmp.eq.s32.totalorder %s27, 1
      %p351 = por %p349, %p350
      %p352 = scmp.ne.s32.totalorder %s344, %s347
      %p353 = scmp.eq.s32.totalorder %s27, 0
      %p354 = por %p352, %p353
      %p355 = scmp.ne.s32.totalorder %s344, %s347
      %p356 = scmp.eq.s32.totalorder %s32, 1
      %p357 = por %p355, %p356
      %p358 = scmp.ne.s32.totalorder %s347, %s348
      %p359 = scmp.eq.s32.totalorder %s32, 0
      %p360 = por %p358, %p359
      %p361 = scmp.ne.s32.totalorder %s347, %s348
      %p362 = scmp.eq.s32.totalorder %s33, 1
      %p363 = por %p361, %p362
      %p365 = scmp.ne.s32.totalorder %s348, %s364
      %p366 = scmp.eq.s32.totalorder %s33, 0
      %p367 = por %p365, %p366
      %s369 = sadd.s32 %s368, 1
      %p372 = scmp.eq.s32.totalorder %s27, 1
      %p373 = scmp.ne.s32.totalorder %s368, %s370
      %p374 = scmp.eq.s32.totalorder %s27, 0
      %p375 = por %p373, %p374
      %p376 = scmp.ne.s32.totalorder %s368, %s370
      %p377 = scmp.eq.s32.totalorder %s32, 1
      %p378 = por %p376, %p377
      %p379 = scmp.ne.s32.totalorder %s370, %s371
      %p380 = scmp.eq.s32.totalorder %s32, 0
      %p381 = por %p379, %p380
      %p382 = scmp.ne.s32.totalorder %s370, %s371
      %p383 = scmp.eq.s32.totalorder %s33, 1
      %p384 = por %p382, %p383
      %p386 = scmp.ne.s32.totalorder %s371, %s385
      %p387 = scmp.eq.s32.totalorder %s33, 0
      %p388 = por %p386, %p387
      %s390 = sadd.s32 %s389, 1
      %p393 = scmp.eq.s32.totalorder %s27, 1
      %p394 = scmp.ne.s32.totalorder %s389, %s391
      %p395 = scmp.eq.s32.totalorder %s27, 0
      %p396 = por %p394, %p395
      %p397 = scmp.ne.s32.totalorder %s389, %s391
      %p398 = scmp.eq.s32.totalorder %s32, 1
      %p399 = por %p397, %p398
      %p400 = scmp.ne.s32.totalorder %s391, %s392
      %p401 = scmp.eq.s32.totalorder %s32, 0
      %p402 = por %p400, %p401
      %p403 = scmp.ne.s32.totalorder %s391, %s392
      %p404 = scmp.eq.s32.totalorder %s33, 1
      %p405 = por %p403, %p404
      %p407 = scmp.ne.s32.totalorder %s392, %s406
      %p408 = scmp.eq.s32.totalorder %s33, 0
      %p409 = por %p407, %p408
      %s411 = sadd.s32 %s410, 1
      %p414 = scmp.eq.s32.totalorder %s27, 1
      %p415 = scmp.ne.s32.totalorder %s410, %s412
      %p416 = scmp.eq.s32.totalorder %s27, 0
      %p417 = por %p415, %p416
      %p418 = scmp.ne.s32.totalorder %s410, %s412
      %p419 = scmp.eq.s32.totalorder %s32, 1
      %p420 = por %p418, %p419
      %p421 = scmp.ne.s32.totalorder %s412, %s413
      %p422 = scmp.eq.s32.totalorder %s32, 0
      %p423 = por %p421, %p422
      %p424 = scmp.ne.s32.totalorder %s412, %s413
      %p425 = scmp.eq.s32.totalorder %s33, 1
      %p426 = por %p424, %p425
      %p428 = scmp.ne.s32.totalorder %s413, %s427
      %p429 = scmp.eq.s32.totalorder %s33, 0
      %p430 = por %p428, %p429
      %p431 = scmp.le.s32.totalorder 1, %s27
      %p432 = scmp.lt.s32.totalorder %s27, 3
      %p433 = pnand %p431, %p432
      %p434 = pneg %p433
      // Predicated region
      $region9: #{entity_context_encoder_forward.1} parent=5 // pred_check
        _
      $region10: #{entity_context_encoder_forward.1} parent=5 // pred_check_branch
        %436 = sbr.rel (%p433) target = $region12
      $region11: #{entity_context_encoder_forward.1} parent=5 // pred_region
        %s437 = ssub.s32 %s27, 1
        // Predicated region
        $region13: #{entity_context_encoder_forward.1} parent=11 // pred_check
          %p438 = pneg %p48
        $region14: #{entity_context_encoder_forward.1} parent=11 // pred_check_branch
          %440 = sbr.rel (%p438) target = $region16
        $region15: #{entity_context_encoder_forward.1} parent=11 // pred_region
          %s442 = ssub.s32 256, 256
          %443 = vsyncadd [#allocation4], %s442
          %s444 = sshll.u32 [#allocation3], 4
          %s445 = int_to_ptr.vmem [resolvable:$true] %s444
          %450 = dma.hbm_to_vmem [thread:$0]  %s0, 256, %s445, [#allocation4], 32, 32, 2
        $region16: #{entity_context_encoder_forward.1} parent=11 // pred_fallthru
          _
        // Predicated region
        $region17: #{entity_context_encoder_forward.1} parent=11 // pred_check
          %p451 = pneg %p381
        $region18: #{entity_context_encoder_forward.1} parent=11 // pred_check_branch
          %453 = sbr.rel (%p451) target = $region20
        $region19: #{entity_context_encoder_forward.1} parent=11 // pred_region
          _
        $region20: #{entity_context_encoder_forward.1} parent=11 // pred_fallthru
          _
        // Predicated region
        $region21: #{entity_context_encoder_forward.1} parent=11 // pred_check
          %p454 = pneg %p402
        $region22: #{entity_context_encoder_forward.1} parent=11 // pred_check_branch
          %456 = sbr.rel (%p454) target = $region24
        $region23: #{entity_context_encoder_forward.1} parent=11 // pred_region
          %s458 = ssub.s32 16, 16
          %459 = vsyncadd [#allocation10], %s458
          %s461 = sshll.u32 [#allocation9], 4
          %s462 = int_to_ptr.vmem [resolvable:$true] %s461
          %464 = dma.hbm_to_vmem [thread:$0]  %s14, 16, %s462, [#allocation10]
        $region24: #{entity_context_encoder_forward.1} parent=11 // pred_fallthru
          _
      $region12: #{entity_context_encoder_forward.1} parent=5 // pred_fallthru
        _
      %p465 = scmp.lt.s32.totalorder %s27, 2
      // Predicated region
      $region25: #{entity_context_encoder_forward.1} parent=5 // pred_check
        %p466 = pneg %p465
      $region26: #{entity_context_encoder_forward.1} parent=5 // pred_check_branch
        %468 = sbr.rel (%p466) target = $region28
      $region27: #{entity_context_encoder_forward.1} parent=5 // pred_region
        // Predicated region
        $region29: #{entity_context_encoder_forward.1} parent=27 // pred_check
          %p469 = pneg %p68
        $region30: #{entity_context_encoder_forward.1} parent=27 // pred_check_branch
          %471 = sbr.rel (%p469) target = $region32
        $region31: #{entity_context_encoder_forward.1} parent=27 // pred_region
          %p472 = scmp.lt.s32.totalorder %s27, 1
          %s473 = scalar_select %p472, %s27, 1
          %s474 = smul.addr %s473, 4
          %s475 = smul.addr %s474, 4
          %s476 = scalar_lea.vmem %s1, %s475
        $region32: #{entity_context_encoder_forward.1} parent=27 // pred_fallthru
          _
        // Predicated region
        $region33: #{entity_context_encoder_forward.1} parent=27 // pred_check
          %p477 = pneg %p94
        $region34: #{entity_context_encoder_forward.1} parent=27 // pred_check_branch
          %479 = sbr.rel (%p477) target = $region36
        $region35: #{entity_context_encoder_forward.1} parent=27 // pred_region
          %p480 = scmp.lt.s32.totalorder %s27, 1
          %s481 = scalar_select %p480, %s27, 1
          %s482 = scalar_lea.vmem %s2, %s481
        $region36: #{entity_context_encoder_forward.1} parent=27 // pred_fallthru
          _
        // Predicated region
        $region37: #{entity_context_encoder_forward.1} parent=27 // pred_check
          %p483 = pneg %p120
        $region38: #{entity_context_encoder_forward.1} parent=27 // pred_check_branch
          %485 = sbr.rel (%p483) target = $region40
        $region39: #{entity_context_encoder_forward.1} parent=27 // pred_region
          %p486 = scmp.lt.s32.totalorder %s27, 1
          %s487 = scalar_select %p486, %s27, 1
          %s488 = smul.addr %s487, 4
          %s489 = smul.addr %s488, 4
          %s490 = scalar_lea.vmem %s3, %s489
        $region40: #{entity_context_encoder_forward.1} parent=27 // pred_fallthru
          _
        // Predicated region
        $region41: #{entity_context_encoder_forward.1} parent=27 // pred_check
          %p491 = pneg %p146
        $region42: #{entity_context_encoder_forward.1} parent=27 // pred_check_branch
          %493 = sbr.rel (%p491) target = $region44
        $region43: #{entity_context_encoder_forward.1} parent=27 // pred_region
          %p494 = scmp.lt.s32.totalorder %s27, 1
          %s495 = scalar_select %p494, %s27, 1
          %s496 = scalar_lea.vmem %s4, %s495
        $region44: #{entity_context_encoder_forward.1} parent=27 // pred_fallthru
          _
        // Predicated region
        $region45: #{entity_context_encoder_forward.1} parent=27 // pred_check
          %p497 = pneg %p172
        $region46: #{entity_context_encoder_forward.1} parent=27 // pred_check_branch
          %499 = sbr.rel (%p497) target = $region48
        $region47: #{entity_context_encoder_forward.1} parent=27 // pred_region
          %p500 = scmp.lt.s32.totalorder %s27, 1
          %s501 = scalar_select %p500, %s27, 1
          %s502 = scalar_lea.vmem %s5, %s501
        $region48: #{entity_context_encoder_forward.1} parent=27 // pred_fallthru
          _
        // Predicated region
        $region49: #{entity_context_encoder_forward.1} parent=27 // pred_check
          %p503 = pneg %p198
        $region50: #{entity_context_encoder_forward.1} parent=27 // pred_check_branch
          %505 = sbr.rel (%p503) target = $region52
        $region51: #{entity_context_encoder_forward.1} parent=27 // pred_region
          %p506 = scmp.lt.s32.totalorder %s27, 1
          %s507 = scalar_select %p506, %s27, 1
          %s508 = scalar_lea.vmem %s6, %s507
        $region52: #{entity_context_encoder_forward.1} parent=27 // pred_fallthru
          _
        // Predicated region
        $region53: #{entity_context_encoder_forward.1} parent=27 // pred_check
          %p509 = pneg %p224
        $region54: #{entity_context_encoder_forward.1} parent=27 // pred_check_branch
          %511 = sbr.rel (%p509) target = $region56
        $region55: #{entity_context_encoder_forward.1} parent=27 // pred_region
          %p512 = scmp.lt.s32.totalorder %s27, 1
          %s513 = scalar_select %p512, %s27, 1
          %s514 = scalar_lea.vmem %s7, %s513
        $region56: #{entity_context_encoder_forward.1} parent=27 // pred_fallthru
          _
        // Predicated region
        $region57: #{entity_context_encoder_forward.1} parent=27 // pred_check
          %p515 = pneg %p250
        $region58: #{entity_context_encoder_forward.1} parent=27 // pred_check_branch
          %517 = sbr.rel (%p515) target = $region60
        $region59: #{entity_context_encoder_forward.1} parent=27 // pred_region
          %p518 = scmp.lt.s32.totalorder %s27, 1
          %s519 = scalar_select %p518, %s27, 1
          %s520 = scalar_lea.vmem %s8, %s519
        $region60: #{entity_context_encoder_forward.1} parent=27 // pred_fallthru
          _
        // Predicated region
        $region61: #{entity_context_encoder_forward.1} parent=27 // pred_check
          %p521 = pneg %p276
        $region62: #{entity_context_encoder_forward.1} parent=27 // pred_check_branch
          %523 = sbr.rel (%p521) target = $region64
        $region63: #{entity_context_encoder_forward.1} parent=27 // pred_region
          %p524 = scmp.lt.s32.totalorder %s27, 1
          %s525 = scalar_select %p524, %s27, 1
          %s526 = smul.addr %s525, 4
          %s527 = smul.addr %s526, 4
          %s528 = scalar_lea.vmem %s9, %s527
        $region64: #{entity_context_encoder_forward.1} parent=27 // pred_fallthru
          _
        // Predicated region
        $region65: #{entity_context_encoder_forward.1} parent=27 // pred_check
          %p529 = pneg %p302
        $region66: #{entity_context_encoder_forward.1} parent=27 // pred_check_branch
          %531 = sbr.rel (%p529) target = $region68
        $region67: #{entity_context_encoder_forward.1} parent=27 // pred_region
          %s532 = sand.u32 %s27, 1
          %s533 = scalar_lea.sflag [#allocation7], %s532
          %s534 = sand.u32 %s292, 1
          %s535 = scalar_lea.vmem [#allocation6], %s534
          %s537 = ssub.s32 16, 16
          %538 = vsyncadd %s533, %s537
          %s539 = smul.addr %s27, 16
          %s540 = scalar_lea.hbm %s10, %s539
          %s542 = sshll.u32 %s535, 4
          %s543 = int_to_ptr.vmem [resolvable:$true] %s542
          %545 = dma.hbm_to_vmem [thread:$0]  %s540, 16, %s543, %s533
        $region68: #{entity_context_encoder_forward.1} parent=27 // pred_fallthru
          _
        // Predicated region
        $region69: #{entity_context_encoder_forward.1} parent=27 // pred_check
          %p546 = pneg %p328
        $region70: #{entity_context_encoder_forward.1} parent=27 // pred_check_branch
          %548 = sbr.rel (%p546) target = $region72
        $region71: #{entity_context_encoder_forward.1} parent=27 // pred_region
          %p549 = scmp.lt.s32.totalorder %s27, 1
          %s550 = scalar_select %p549, %s27, 1
          %s551 = smul.addr %s550, 8
          %s552 = smul.addr %s551, 4
          %s553 = scalar_lea.vmem %s11, %s552
        $region72: #{entity_context_encoder_forward.1} parent=27 // pred_fallthru
          _
        // Predicated region
        $region73: #{entity_context_encoder_forward.1} parent=27 // pred_check
          %p554 = pneg %p354
        $region74: #{entity_context_encoder_forward.1} parent=27 // pred_check_branch
          %556 = sbr.rel (%p554) target = $region76
        $region75: #{entity_context_encoder_forward.1} parent=27 // pred_region
          %s557 = sand.u32 %s27, 1
          %s558 = scalar_lea.sflag [#allocation7], %s557
          %s559 = sand.u32 %s344, 1
          %s560 = scalar_lea.vmem [#allocation8], %s559
          %s562 = ssub.s32 16, 16
          %563 = vsyncadd %s558, %s562
          %s564 = smul.addr %s27, 16
          %s565 = scalar_lea.hbm %s12, %s564
          %s567 = sshll.u32 %s560, 4
          %s568 = int_to_ptr.vmem [resolvable:$true] %s567
          %570 = dma.hbm_to_vmem [thread:$0]  %s565, 16, %s568, %s558
        $region76: #{entity_context_encoder_forward.1} parent=27 // pred_fallthru
          _
      $region28: #{entity_context_encoder_forward.1} parent=5 // pred_fallthru
        _
      %p571 = scmp.le.s32.totalorder 1, %s27
      %p572 = scmp.lt.s32.totalorder %s27, 3
      %p573 = pnand %p571, %p572
      %p574 = pneg %p573
      // Predicated region
      $region77: #{entity_context_encoder_forward.1} parent=5 // pred_check
        _
      $region78: #{entity_context_encoder_forward.1} parent=5 // pred_check_branch
        %576 = sbr.rel (%p573) target = $region80
      $region79: #{entity_context_encoder_forward.1} parent=5 // pred_region
        %s577 = ssub.s32 %s27, 1
        // Predicated region
        $region81: #{entity_context_encoder_forward.1} parent=79 // pred_check
          %p578 = pneg %p48
        $region82: #{entity_context_encoder_forward.1} parent=79 // pred_check_branch
          %580 = sbr.rel (%p578) target = $region84
        $region83: #{entity_context_encoder_forward.1} parent=79 // pred_region
          %581 = dma.done [#allocation4], 256
        $region84: #{entity_context_encoder_forward.1} parent=79 // pred_fallthru
          _
        %s582 = sand.u32 %s32, 1
        %s583 = scalar_lea.sflag [#allocation7], %s582
        %s584 = sand.u32 %s295, 1
        %s585 = scalar_lea.vmem [#allocation6], %s584
        // Predicated region
        $region85: #{entity_context_encoder_forward.1} parent=79 // pred_check
          %p586 = pneg %p308
        $region86: #{entity_context_encoder_forward.1} parent=79 // pred_check_branch
          %588 = sbr.rel (%p586) target = $region88
        $region87: #{entity_context_encoder_forward.1} parent=79 // pred_region
          %589 = dma.done %s583, 16
        $region88: #{entity_context_encoder_forward.1} parent=79 // pred_fallthru
          _
        %s590 = sand.u32 %s32, 1
        %s591 = scalar_lea.sflag [#allocation7], %s590
        %s592 = sand.u32 %s347, 1
        %s593 = scalar_lea.vmem [#allocation8], %s592
        // Predicated region
        $region89: #{entity_context_encoder_forward.1} parent=79 // pred_check
          %p594 = pneg %p360
        $region90: #{entity_context_encoder_forward.1} parent=79 // pred_check_branch
          %596 = sbr.rel (%p594) target = $region92
        $region91: #{entity_context_encoder_forward.1} parent=79 // pred_region
          %597 = dma.done %s591, 16
        $region92: #{entity_context_encoder_forward.1} parent=79 // pred_fallthru
          _
        // Predicated region
        $region93: #{entity_context_encoder_forward.1} parent=79 // pred_check
          %p598 = pneg %p402
        $region94: #{entity_context_encoder_forward.1} parent=79 // pred_check_branch
          %600 = sbr.rel (%p598) target = $region96
        $region95: #{entity_context_encoder_forward.1} parent=79 // pred_region
          %601 = dma.done [#allocation10], 16
        $region96: #{entity_context_encoder_forward.1} parent=79 // pred_fallthru
          _
        %p602 = pneg %p48
        %p603 = pneg %p45
        %p604 = scmp.lt.s32.totalorder %s32, 1
        %s605 = scalar_select %p604, %s32, 1
        %s606 = smul.addr %s605, 4
        %s607 = smul.addr %s606, 4
        %s608 = scalar_lea.vmem %s1, %s607
        %p609 = pneg %p74
        %p610 = pneg %p71
        %p611 = scmp.lt.s32.totalorder %s32, 1
        %s612 = scalar_select %p611, %s32, 1
        %s613 = scalar_lea.vmem %s2, %s612
        %p614 = pneg %p100
        %p615 = pneg %p97
        %p616 = scmp.lt.s32.totalorder %s32, 1
        %s617 = scalar_select %p616, %s32, 1
        %s618 = smul.addr %s617, 4
        %s619 = smul.addr %s618, 4
        %s620 = scalar_lea.vmem %s3, %s619
        %p621 = pneg %p126
        %p622 = pneg %p123
        %p623 = scmp.lt.s32.totalorder %s32, 1
        %s624 = scalar_select %p623, %s32, 1
        %s625 = scalar_lea.vmem %s4, %s624
        %p626 = pneg %p152
        %p627 = pneg %p149
        %p628 = scmp.lt.s32.totalorder %s32, 1
        %s629 = scalar_select %p628, %s32, 1
        %s630 = scalar_lea.vmem %s5, %s629
        %p631 = pneg %p178
        %p632 = pneg %p175
        %p633 = scmp.lt.s32.totalorder %s32, 1
        %s634 = scalar_select %p633, %s32, 1
        %s635 = scalar_lea.vmem %s6, %s634
        %p636 = pneg %p204
        %p637 = pneg %p201
        %p638 = scmp.lt.s32.totalorder %s32, 1
        %s639 = scalar_select %p638, %s32, 1
        %s640 = scalar_lea.vmem %s7, %s639
        %p641 = pneg %p230
        %p642 = pneg %p227
        %p643 = scmp.lt.s32.totalorder %s32, 1
        %s644 = scalar_select %p643, %s32, 1
        %s645 = scalar_lea.vmem %s8, %s644
        %p646 = pneg %p256
        %p647 = pneg %p253
        %p648 = scmp.lt.s32.totalorder %s32, 1
        %s649 = scalar_select %p648, %s32, 1
        %s650 = smul.addr %s649, 4
        %s651 = smul.addr %s650, 4
        %s652 = scalar_lea.vmem %s9, %s651
        %p653 = pneg %p282
        %p654 = pneg %p279
        %s655 = sand.u32 %s32, 1
        %s656 = scalar_lea.sflag [#allocation7], %s655
        %s657 = sand.u32 %s295, 1
        %s658 = scalar_lea.vmem [#allocation6], %s657
        %p659 = pneg %p308
        %p660 = pneg %p305
        %p661 = scmp.lt.s32.totalorder %s32, 1
        %s662 = scalar_select %p661, %s32, 1
        %s663 = smul.addr %s662, 8
        %s664 = smul.addr %s663, 4
        %s665 = scalar_lea.vmem %s11, %s664
        %p666 = pneg %p334
        %p667 = pneg %p331
        %s668 = sand.u32 %s32, 1
        %s669 = scalar_lea.sflag [#allocation7], %s668
        %s670 = sand.u32 %s347, 1
        %s671 = scalar_lea.vmem [#allocation8], %s670
        %p672 = pneg %p360
        %p673 = pneg %p357
        %p674 = pneg %p381
        %p675 = pneg %p378
        %p676 = pneg %p402
        %p677 = pneg %p399
        %p678 = pneg %p423
        %p679 = pneg %p420
        %p680 = scmp.lt.s32.totalorder %s32, 1
        %s681 = scalar_select %p680, %s32, 1
        %s682 = smul.addr %s681, 4
        %s683 = smul.addr %s682, 4
        %s684 = scalar_lea.vmem %s1, %s683
        %p685 = scmp.lt.s32.totalorder %s32, 1
        %s686 = scalar_select %p685, %s32, 1
        %s687 = scalar_lea.vmem %s2, %s686
        %p688 = scmp.lt.s32.totalorder %s32, 1
        %s689 = scalar_select %p688, %s32, 1
        %s690 = smul.addr %s689, 4
        %s691 = smul.addr %s690, 4
        %s692 = scalar_lea.vmem %s3, %s691
        %p693 = scmp.lt.s32.totalorder %s32, 1
        %s694 = scalar_select %p693, %s32, 1
        %s695 = scalar_lea.vmem %s4, %s694
        %p696 = scmp.lt.s32.totalorder %s32, 1
        %s697 = scalar_select %p696, %s32, 1
        %s698 = scalar_lea.vmem %s5, %s697
        %p699 = scmp.lt.s32.totalorder %s32, 1
        %s700 = scalar_select %p699, %s32, 1
        %s701 = scalar_lea.vmem %s6, %s700
        %p702 = scmp.lt.s32.totalorder %s32, 1
        %s703 = scalar_select %p702, %s32, 1
        %s704 = scalar_lea.vmem %s7, %s703
        %p705 = scmp.lt.s32.totalorder %s32, 1
        %s706 = scalar_select %p705, %s32, 1
        %s707 = scalar_lea.vmem %s8, %s706
        %p708 = scmp.lt.s32.totalorder %s32, 1
        %s709 = scalar_select %p708, %s32, 1
        %s710 = smul.addr %s709, 4
        %s711 = smul.addr %s710, 4
        %s712 = scalar_lea.vmem %s9, %s711
        %p713 = scmp.lt.s32.totalorder %s32, 1
        %s714 = scalar_select %p713, %s32, 1
        %s715 = smul.addr %s714, 8
        %s716 = smul.addr %s715, 4
        %s717 = scalar_lea.vmem %s11, %s716
        %p719 = scmp.eq.s32.totalorder %s32, 0
        // Predicated region
        $region97: #{entity_context_encoder_forward.1} parent=79 // pred_check
          %p720 = pneg %p719
        $region98: #{entity_context_encoder_forward.1} parent=79 // pred_check_branch
          %722 = sbr.rel (%p720) target = $region100
        $region99: #{entity_context_encoder_forward.1} parent=79 // pred_region
          %v723 = vld [vmem:[#allocation3] sm:$0x3]
          %v724 = vld [vmem:[#allocation3 + $0x2] sm:$0x3]
          %v725 = vld [vmem:[#allocation3 + $0x4] sm:$0x3]
          %v726 = vld [vmem:[#allocation3 + $0x6] sm:$0x3]
          %v727 = vld [vmem:[#allocation3 + $0x8] sm:$0x3]
          %v728 = vld [vmem:[#allocation3 + $0xa] sm:$0x3]
          %v729 = vld [vmem:[#allocation3 + $0xc] sm:$0x3]
          %v730 = vld [vmem:[#allocation3 + $0xe] sm:$0x3]
          %v731 = vcombine.low %v723, %v725
          %v733 = vunpack.c.l.s4 1983009808
          %v734 = vunpack.c.0.s8 %v733
          %v735 = vlaneseq
          %v736 = vshrl.u32 %v735, 7
          %v737 = vsub.s32 %v734, %v736
          %v738 = vrot.slane %v731, %v737
          %v739 = vcombine.low %v724, %v726
          %v741 = vunpack.c.l.s4 1983009808
          %v742 = vunpack.c.0.s8 %v741
          %v743 = vlaneseq
          %v744 = vshrl.u32 %v743, 7
          %v745 = vsub.s32 %v742, %v744
          %v746 = vrot.slane %v739, %v745
          %v747 = vcombine.low %v727, %v729
          %v749 = vunpack.c.l.s4 1983009808
          %v750 = vunpack.c.0.s8 %v749
          %v751 = vlaneseq
          %v752 = vshrl.u32 %v751, 7
          %v753 = vsub.s32 %v750, %v752
          %v754 = vrot.slane %v747, %v753
          %v755 = vcombine.low %v728, %v730
          %v757 = vunpack.c.l.s4 1983009808
          %v758 = vunpack.c.0.s8 %v757
          %v759 = vlaneseq
          %v760 = vshrl.u32 %v759, 7
          %v761 = vsub.s32 %v758, %v760
          %v762 = vrot.slane %v755, %v761
          %v763 = vcombine.low %v738, %v746
          %v765 = vunpack.c.l.s4 1934713408
          %v766 = vunpack.c.0.s8 %v765
          %v767 = vlaneseq
          %v768 = vshrl.u32 %v767, 7
          %v769 = vsub.s32 %v766, %v768
          %v770 = vrot.slane %v763, %v769
          %v771 = vcombine.low %v754, %v762
          %v773 = vunpack.c.l.s4 1934713408
          %v774 = vunpack.c.0.s8 %v773
          %v775 = vlaneseq
          %v776 = vshrl.u32 %v775, 7
          %v777 = vsub.s32 %v774, %v776
          %v778 = vrot.slane %v771, %v777
          %v779 = vcombine.low %v770, %v778
          %v780 = vcombine.high %v770, %v778
          %vm781 = vcmask 261120
          %782 = vst.msk [vmem:[#allocation2] sm:$0xff] %vm781, %v779
          %783 = vst.msk [vmem:[#allocation2 + $0x8] sm:$0xff] %vm781, %v780
        $region100: #{entity_context_encoder_forward.1} parent=79 // pred_fallthru
          _
        %v784 = vld [vmem:[#allocation2] sm:$0xff]
        %v785 = vld [vmem:[#allocation2 + $0x8] sm:$0xff]
        %v786 = vpack.c.bf16 %v785, %v784
        %v787 = vld [vmem:[%s684] sm:$0xf]
        %v788 = vld [vmem:[%s684 + $0x4] sm:$0xf]
        %v789 = vld [vmem:[%s684 + $0x8] sm:$0xf]
        %v790 = vld [vmem:[%s684 + $0xc] sm:$0xf]
        %v791 = vld [vmem:[%s687] sm:$0x1]
        %v793 = vlaneseq
        %v794 = vshrl.u32 %v793, 7
        %v795 = vsub.s32 0, %v794
        %v796 = vrot.slane %v791, %v795
        %v802 = vunpack.c.l.b16 %v787
        %v803 = vunpack.c.l.b16 %v788
        %v804 = vunpack.c.l.b16 %v789
        %v805 = vunpack.c.l.b16 %v790
        %v806 = vpack.c.b16 %v803, %v802
        %v807 = vpack.c.b16 %v805, %v804
        %vm810 = vcmask 261120
        %v812 = vsel %vm810, %v786, 0
        %814 = vmatprep.subr.bf16.mxu0 0
        %815 = vmatpush1.bf16.msra.mxu0 %v806
        %816 = vmatprep.subr.bf16.mxu0 0
        %817 = vmatpush1.bf16.msra.mxu0 %v807
        %818 = vmatprep.subr.bf16.mxu0 0
        %819 = vmatpush1.bf16.msra.mxu0 0
        %820 = vmatprep.subr.bf16.mxu0 0
        %821 = vmatpush1.bf16.msra.mxu0 0
        %822 = vmatprep.subr.bf16.mxu0 0
        %823 = vmatpush1.bf16.msra.mxu0 0
        %824 = vmatprep.subr.bf16.mxu0 0
        %825 = vmatpush1.bf16.msra.mxu0 0
        %826 = vmatprep.subr.bf16.mxu0 0
        %827 = vmatpush1.bf16.msra.mxu0 0
        %828 = vmatprep.subr.bf16.mxu0 0
        %829 = vmatpush1.bf16.msra.mxu0 0
        %830 = vmatprep.subr.bf16.mxu0 0
        %831 = vmatpush1.bf16.msra.mxu0 0
        %832 = vmatprep.subr.bf16.mxu0 0
        %833 = vmatpush1.bf16.msra.mxu0 0
        %834 = vmatprep.subr.bf16.mxu0 0
        %835 = vmatpush1.bf16.msra.mxu0 0
        %836 = vmatprep.subr.bf16.mxu0 0
        %837 = vmatpush1.bf16.msra.mxu0 0
        %838 = vmatprep.subr.bf16.mxu0 0
        %839 = vmatpush1.bf16.msra.mxu0 0
        %840 = vmatprep.subr.bf16.mxu0 0
        %841 = vmatpush1.bf16.msra.mxu0 0
        %842 = vmatprep.subr.bf16.mxu0 0
        %843 = vmatpush1.bf16.msra.mxu0 0
        %844 = vmatprep.subr.bf16.mxu0 0
        %845 = vmatpush1.bf16.msra.mxu0 0
        %846 = vmatprep.mubr.bf16.mxu0 0
        %847 = vmatmul.mubr.bf16.gmra.mrb[0].mxu0 %v812
        %v848 = vpop.f32.mrb[0].mxu0
        %v849 = vadd.f32 %v796, %v848
        %v850 = vpop.f32.mrb[0].mxu0
        %v851 = vpop.f32.mrb[0].mxu0
        %v852 = vadd.f32 %v796, %v851
        %v853 = vpop.f32.mrb[0].mxu0
        %854 = vdwg.mxu0
        %857 = vrot.lane.b32.xlu0 %v849, 120
        %v858 = vpop.permute.xlu0 %857
        %859 = vrot.lane.b32.xlu0 %v852, 120
        %v860 = vpop.permute.xlu0 %859
        %863 = vrot.lane.b32.xlu0 %v849, 112
        %v864 = vpop.permute.xlu0 %863
        %865 = vrot.lane.b32.xlu0 %v852, 112
        %v866 = vpop.permute.xlu0 %865
        %869 = vrot.lane.b32.xlu0 %v849, 104
        %v870 = vpop.permute.xlu0 %869
        %871 = vrot.lane.b32.xlu0 %v852, 104
        %v872 = vpop.permute.xlu0 %871
        %v875 = vpack.c.bf16 %v849, %v849
        %v876 = vpack.c.bf16 %v852, %v852
        %v877 = vpack.c.bf16 %v858, %v858
        %v878 = vpack.c.bf16 %v860, %v860
        %v879 = vpack.c.bf16 %v864, %v864
        %v880 = vpack.c.bf16 %v866, %v866
        %v881 = vpack.c.bf16 %v870, %v870
        %v882 = vpack.c.bf16 %v872, %v872
        %884 = vrot.lane.b32.xlu0 %v875, 96
        %v885 = vpop.permute.xlu0 %884
        %vm886 = vcmask 64512
        %v888 = vsel %vm886, %v875, 0
        %v891 = vsel %vm886, %v885, 0
        %893 = vmatprep.subr.bf16.mxu0 0
        %894 = vmatpush1.bf16.xpose.msra.mxu0 %v891
        %895 = vmatprep.subr.bf16.mxu0 0
        %896 = vmatpush1.bf16.xpose.msra.mxu0 0
        %897 = vmatprep.subr.bf16.mxu0 0
        %898 = vmatpush1.bf16.xpose.msra.mxu0 0
        %899 = vmatprep.subr.bf16.mxu0 0
        %900 = vmatpush1.bf16.xpose.msra.mxu0 0
        %901 = vmatprep.subr.bf16.mxu0 0
        %902 = vmatpush1.bf16.xpose.msra.mxu0 0
        %903 = vmatprep.subr.bf16.mxu0 0
        %904 = vmatpush1.bf16.xpose.msra.mxu0 0
        %905 = vmatprep.subr.bf16.mxu0 0
        %906 = vmatpush1.bf16.xpose.msra.mxu0 0
        %907 = vmatprep.subr.bf16.mxu0 0
        %908 = vmatpush1.bf16.xpose.msra.mxu0 0
        %909 = vmatprep.subr.bf16.mxu0 0
        %910 = vmatpush1.bf16.xpose.msra.mxu0 0
        %911 = vmatprep.subr.bf16.mxu0 0
        %912 = vmatpush1.bf16.xpose.msra.mxu0 0
        %913 = vmatprep.subr.bf16.mxu0 0
        %914 = vmatpush1.bf16.xpose.msra.mxu0 0
        %915 = vmatprep.subr.bf16.mxu0 0
        %916 = vmatpush1.bf16.xpose.msra.mxu0 0
        %917 = vmatprep.subr.bf16.mxu0 0
        %918 = vmatpush1.bf16.xpose.msra.mxu0 0
        %919 = vmatprep.subr.bf16.mxu0 0
        %920 = vmatpush1.bf16.xpose.msra.mxu0 0
        %921 = vmatprep.subr.bf16.mxu0 0
        %922 = vmatpush1.bf16.xpose.msra.mxu0 0
        %923 = vmatprep.subr.bf16.mxu0 0
        %924 = vmatpush1.bf16.xpose.msra.mxu0 0
        %925 = vmatprep.mubr.bf16.mxu0 0
        %926 = vmatmul.mubr.bf16.gmra.mrb[0].mxu0 %v888
        %v927 = vpop.f32.mrb[0].mxu0
        %v928 = vadd.f32 0.0, %v927
        %v929 = vpop.f32.mrb[0].mxu0
        %v930 = vpop.f32.mrb[0].mxu0
        %v931 = vpop.f32.mrb[0].mxu0
        %932 = vdwg.mxu0
        %934 = vrot.lane.b32.xlu0 %v876, 96
        %v935 = vpop.permute.xlu0 %934
        %v937 = vsel %vm886, %v876, 0
        %v940 = vsel %vm886, %v935, 0
        %942 = vmatprep.subr.bf16.mxu0 0
        %943 = vmatpush1.bf16.xpose.msra.mxu0 %v940
        %944 = vmatprep.subr.bf16.mxu0 0
        %945 = vmatpush1.bf16.xpose.msra.mxu0 0
        %946 = vmatprep.subr.bf16.mxu0 0
        %947 = vmatpush1.bf16.xpose.msra.mxu0 0
        %948 = vmatprep.subr.bf16.mxu0 0
        %949 = vmatpush1.bf16.xpose.msra.mxu0 0
        %950 = vmatprep.subr.bf16.mxu0 0
        %951 = vmatpush1.bf16.xpose.msra.mxu0 0
        %952 = vmatprep.subr.bf16.mxu0 0
        %953 = vmatpush1.bf16.xpose.msra.mxu0 0
        %954 = vmatprep.subr.bf16.mxu0 0
        %955 = vmatpush1.bf16.xpose.msra.mxu0 0
        %956 = vmatprep.subr.bf16.mxu0 0
        %957 = vmatpush1.bf16.xpose.msra.mxu0 0
        %958 = vmatprep.subr.bf16.mxu0 0
        %959 = vmatpush1.bf16.xpose.msra.mxu0 0
        %960 = vmatprep.subr.bf16.mxu0 0
        %961 = vmatpush1.bf16.xpose.msra.mxu0 0
        %962 = vmatprep.subr.bf16.mxu0 0
        %963 = vmatpush1.bf16.xpose.msra.mxu0 0
        %964 = vmatprep.subr.bf16.mxu0 0
        %965 = vmatpush1.bf16.xpose.msra.mxu0 0
        %966 = vmatprep.subr.bf16.mxu0 0
        %967 = vmatpush1.bf16.xpose.msra.mxu0 0
        %968 = vmatprep.subr.bf16.mxu0 0
        %969 = vmatpush1.bf16.xpose.msra.mxu0 0
        %970 = vmatprep.subr.bf16.mxu0 0
        %971 = vmatpush1.bf16.xpose.msra.mxu0 0
        %972 = vmatprep.subr.bf16.mxu0 0
        %973 = vmatpush1.bf16.xpose.msra.mxu0 0
        %974 = vmatprep.mubr.bf16.mxu0 0
        %975 = vmatmul.mubr.bf16.gmra.mrb[0].mxu0 %v937
        %v976 = vpop.f32.mrb[0].mxu0
        %v977 = vadd.f32 0.0, %v976
        %v978 = vpop.f32.mrb[0].mxu0
        %v979 = vpop.f32.mrb[0].mxu0
        %v980 = vpop.f32.mrb[0].mxu0
        %981 = vdwg.mxu0
        %983 = vrot.lane.b32.xlu0 %v877, 96
        %v984 = vpop.permute.xlu0 %983
        %v986 = vsel %vm886, %v877, 0
        %v989 = vsel %vm886, %v984, 0
        %991 = vmatprep.subr.bf16.mxu0 0
        %992 = vmatpush1.bf16.xpose.msra.mxu0 %v989
        %993 = vmatprep.subr.bf16.mxu0 0
        %994 = vmatpush1.bf16.xpose.msra.mxu0 0
        %995 = vmatprep.subr.bf16.mxu0 0
        %996 = vmatpush1.bf16.xpose.msra.mxu0 0
        %997 = vmatprep.subr.bf16.mxu0 0
        %998 = vmatpush1.bf16.xpose.msra.mxu0 0
        %999 = vmatprep.subr.bf16.mxu0 0
        %1000 = vmatpush1.bf16.xpose.msra.mxu0 0
        %1001 = vmatprep.subr.bf16.mxu0 0
        %1002 = vmatpush1.bf16.xpose.msra.mxu0 0
        %1003 = vmatprep.subr.bf16.mxu0 0
        %1004 = vmatpush1.bf16.xpose.msra.mxu0 0
        %1005 = vmatprep.subr.bf16.mxu0 0
        %1006 = vmatpush1.bf16.xpose.msra.mxu0 0
        %1007 = vmatprep.subr.bf16.mxu0 0
        %1008 = vmatpush1.bf16.xpose.msra.mxu0 0
        %1009 = vmatprep.subr.bf16.mxu0 0
        %1010 = vmatpush1.bf16.xpose.msra.mxu0 0
        %1011 = vmatprep.subr.bf16.mxu0 0
        %1012 = vmatpush1.bf16.xpose.msra.mxu0 0
        %1013 = vmatprep.subr.bf16.mxu0 0
        %1014 = vmatpush1.bf16.xpose.msra.mxu0 0
        %1015 = vmatprep.subr.bf16.mxu0 0
        %1016 = vmatpush1.bf16.xpose.msra.mxu0 0
        %1017 = vmatprep.subr.bf16.mxu0 0
        %1018 = vmatpush1.bf16.xpose.msra.mxu0 0
        %1019 = vmatprep.subr.bf16.mxu0 0
        %1020 = vmatpush1.bf16.xpose.msra.mxu0 0
        %1021 = vmatprep.subr.bf16.mxu0 0
        %1022 = vmatpush1.bf16.xpose.msra.mxu0 0
        %1023 = vmatprep.mubr.bf16.mxu0 0
        %1024 = vmatmul.mubr.bf16.gmra.mrb[0].mxu0 %v986
        %v1025 = vpop.f32.mrb[0].mxu0
        %v1026 = vadd.f32 0.0, %v1025
        %v1027 = vpop.f32.mrb[0].mxu0
        %v1028 = vpop.f32.mrb[0].mxu0
        %v1029 = vpop.f32.mrb[0].mxu0
        %1030 = vdwg.mxu0
        %1032 = vrot.lane.b32.xlu0 %v878, 96
        %v1033 = vpop.permute.xlu0 %1032
        %v1035 = vsel %vm886, %v878, 0
        %v1038 = vsel %vm886, %v1033, 0
        %1040 = vmatprep.subr.bf16.mxu0 0
        %1041 = vmatpush1.bf16.xpose.msra.mxu0 %v1038
        %1042 = vmatprep.subr.bf16.mxu0 0
        %1043 = vmatpush1.bf16.xpose.msra.mxu0 0
        %1044 = vmatprep.subr.bf16.mxu0 0
        %1045 = vmatpush1.bf16.xpose.msra.mxu0 0
        %1046 = vmatprep.subr.bf16.mxu0 0
        %1047 = vmatpush1.bf16.xpose.msra.mxu0 0
        %1048 = vmatprep.subr.bf16.mxu0 0
        %1049 = vmatpush1.bf16.xpose.msra.mxu0 0
        %1050 = vmatprep.subr.bf16.mxu0 0
        %1051 = vmatpush1.bf16.xpose.msra.mxu0 0
        %1052 = vmatprep.subr.bf16.mxu0 0
        %1053 = vmatpush1.bf16.xpose.msra.mxu0 0
        %1054 = vmatprep.subr.bf16.mxu0 0
        %1055 = vmatpush1.bf16.xpose.msra.mxu0 0
        %1056 = vmatprep.subr.bf16.mxu0 0
        %1057 = vmatpush1.bf16.xpose.msra.mxu0 0
        %1058 = vmatprep.subr.bf16.mxu0 0
        %1059 = vmatpush1.bf16.xpose.msra.mxu0 0
        %1060 = vmatprep.subr.bf16.mxu0 0
        %1061 = vmatpush1.bf16.xpose.msra.mxu0 0
        %1062 = vmatprep.subr.bf16.mxu0 0
        %1063 = vmatpush1.bf16.xpose.msra.mxu0 0
        %1064 = vmatprep.subr.bf16.mxu0 0
        %1065 = vmatpush1.bf16.xpose.msra.mxu0 0
        %1066 = vmatprep.subr.bf16.mxu0 0
        %1067 = vmatpush1.bf16.xpose.msra.mxu0 0
        %1068 = vmatprep.subr.bf16.mxu0 0
        %1069 = vmatpush1.bf16.xpose.msra.mxu0 0
        %1070 = vmatprep.subr.bf16.mxu0 0
        %1071 = vmatpush1.bf16.xpose.msra.mxu0 0
        %1072 = vmatprep.mubr.bf16.mxu0 0
        %1073 = vmatmul.mubr.bf16.gmra.mrb[0].mxu0 %v1035
        %v1074 = vpop.f32.mrb[0].mxu0
        %v1075 = vadd.f32 0.0, %v1074
        %v1076 = vpop.f32.mrb[0].mxu0
        %v1077 = vpop.f32.mrb[0].mxu0
        %v1078 = vpop.f32.mrb[0].mxu0
        %1079 = vdwg.mxu0
        %1081 = vrot.lane.b32.xlu0 %v879, 96
        %v1082 = vpop.permute.xlu0 %1081
        %v1084 = vsel %vm886, %v879, 0
        %v1087 = vsel %vm886, %v1082, 0
        %1089 = vmatprep.subr.bf16.mxu0 0
        %1090 = vmatpush1.bf16.xpose.msra.mxu0 %v1087
        %1091 = vmatprep.subr.bf16.mxu0 0
        %1092 = vmatpush1.bf16.xpose.msra.mxu0 0
        %1093 = vmatprep.subr.bf16.mxu0 0
        %1094 = vmatpush1.bf16.xpose.msra.mxu0 0
        %1095 = vmatprep.subr.bf16.mxu0 0
        %1096 = vmatpush1.bf16.xpose.msra.mxu0 0
        %1097 = vmatprep.subr.bf16.mxu0 0
        %1098 = vmatpush1.bf16.xpose.msra.mxu0 0
        %1099 = vmatprep.subr.bf16.mxu0 0
        %1100 = vmatpush1.bf16.xpose.msra.mxu0 0
        %1101 = vmatprep.subr.bf16.mxu0 0
        %1102 = vmatpush1.bf16.xpose.msra.mxu0 0
        %1103 = vmatprep.subr.bf16.mxu0 0
        %1104 = vmatpush1.bf16.xpose.msra.mxu0 0
        %1105 = vmatprep.subr.bf16.mxu0 0
        %1106 = vmatpush1.bf16.xpose.msra.mxu0 0
        %1107 = vmatprep.subr.bf16.mxu0 0
        %1108 = vmatpush1.bf16.xpose.msra.mxu0 0
        %1109 = vmatprep.subr.bf16.mxu0 0
        %1110 = vmatpush1.bf16.xpose.msra.mxu0 0
        %1111 = vmatprep.subr.bf16.mxu0 0
        %1112 = vmatpush1.bf16.xpose.msra.mxu0 0
        %1113 = vmatprep.subr.bf16.mxu0 0
        %1114 = vmatpush1.bf16.xpose.msra.mxu0 0
        %1115 = vmatprep.subr.bf16.mxu0 0
        %1116 = vmatpush1.bf16.xpose.msra.mxu0 0
        %1117 = vmatprep.subr.bf16.mxu0 0
        %1118 = vmatpush1.bf16.xpose.msra.mxu0 0
        %1119 = vmatprep.subr.bf16.mxu0 0
        %1120 = vmatpush1.bf16.xpose.msra.mxu0 0
        %1121 = vmatprep.mubr.bf16.mxu0 0
        %1122 = vmatmul.mubr.bf16.gmra.mrb[0].mxu0 %v1084
        %v1123 = vpop.f32.mrb[0].mxu0
        %v1124 = vadd.f32 0.0, %v1123
        %v1125 = vpop.f32.mrb[0].mxu0
        %v1126 = vpop.f32.mrb[0].mxu0
        %v1127 = vpop.f32.mrb[0].mxu0
        %1128 = vdwg.mxu0
        %1130 = vrot.lane.b32.xlu0 %v880, 96
        %v1131 = vpop.permute.xlu0 %1130
        %v1133 = vsel %vm886, %v880, 0
        %v1136 = vsel %vm886, %v1131, 0
        %1138 = vmatprep.subr.bf16.mxu0 0
        %1139 = vmatpush1.bf16.xpose.msra.mxu0 %v1136
        %1140 = vmatprep.subr.bf16.mxu0 0
        %1141 = vmatpush1.bf16.xpose.msra.mxu0 0
        %1142 = vmatprep.subr.bf16.mxu0 0
        %1143 = vmatpush1.bf16.xpose.msra.mxu0 0
        %1144 = vmatprep.subr.bf16.mxu0 0
        %1145 = vmatpush1.bf16.xpose.msra.mxu0 0
        %1146 = vmatprep.subr.bf16.mxu0 0
        %1147 = vmatpush1.bf16.xpose.msra.mxu0 0
        %1148 = vmatprep.subr.bf16.mxu0 0
        %1149 = vmatpush1.bf16.xpose.msra.mxu0 0
        %1150 = vmatprep.subr.bf16.mxu0 0
        %1151 = vmatpush1.bf16.xpose.msra.mxu0 0
        %1152 = vmatprep.subr.bf16.mxu0 0
        %1153 = vmatpush1.bf16.xpose.msra.mxu0 0
        %1154 = vmatprep.subr.bf16.mxu0 0
        %1155 = vmatpush1.bf16.xpose.msra.mxu0 0
        %1156 = vmatprep.subr.bf16.mxu0 0
        %1157 = vmatpush1.bf16.xpose.msra.mxu0 0
        %1158 = vmatprep.subr.bf16.mxu0 0
        %1159 = vmatpush1.bf16.xpose.msra.mxu0 0
        %1160 = vmatprep.subr.bf16.mxu0 0
        %1161 = vmatpush1.bf16.xpose.msra.mxu0 0
        %1162 = vmatprep.subr.bf16.mxu0 0
        %1163 = vmatpush1.bf16.xpose.msra.mxu0 0
        %1164 = vmatprep.subr.bf16.mxu0 0
        %1165 = vmatpush1.bf16.xpose.msra.mxu0 0
        %1166 = vmatprep.subr.bf16.mxu0 0
        %1167 = vmatpush1.bf16.xpose.msra.mxu0 0
        %1168 = vmatprep.subr.bf16.mxu0 0
        %1169 = vmatpush1.bf16.xpose.msra.mxu0 0
        %1170 = vmatprep.mubr.bf16.mxu0 0
        %1171 = vmatmul.mubr.bf16.gmra.mrb[0].mxu0 %v1133
        %v1172 = vpop.f32.mrb[0].mxu0
        %v1173 = vadd.f32 0.0, %v1172
        %v1174 = vpop.f32.mrb[0].mxu0
        %v1175 = vpop.f32.mrb[0].mxu0
        %v1176 = vpop.f32.mrb[0].mxu0
        %1177 = vdwg.mxu0
        %1179 = vrot.lane.b32.xlu0 %v881, 96
        %v1180 = vpop.permute.xlu0 %1179
        %v1182 = vsel %vm886, %v881, 0
        %v1185 = vsel %vm886, %v1180, 0
        %1187 = vmatprep.subr.bf16.mxu0 0
        %1188 = vmatpush1.bf16.xpose.msra.mxu0 %v1185
        %1189 = vmatprep.subr.bf16.mxu0 0
        %1190 = vmatpush1.bf16.xpose.msra.mxu0 0
        %1191 = vmatprep.subr.bf16.mxu0 0
        %1192 = vmatpush1.bf16.xpose.msra.mxu0 0
        %1193 = vmatprep.subr.bf16.mxu0 0
        %1194 = vmatpush1.bf16.xpose.msra.mxu0 0
        %1195 = vmatprep.subr.bf16.mxu0 0
        %1196 = vmatpush1.bf16.xpose.msra.mxu0 0
        %1197 = vmatprep.subr.bf16.mxu0 0
        %1198 = vmatpush1.bf16.xpose.msra.mxu0 0
        %1199 = vmatprep.subr.bf16.mxu0 0
        %1200 = vmatpush1.bf16.xpose.msra.mxu0 0
        %1201 = vmatprep.subr.bf16.mxu0 0
        %1202 = vmatpush1.bf16.xpose.msra.mxu0 0
        %1203 = vmatprep.subr.bf16.mxu0 0
        %1204 = vmatpush1.bf16.xpose.msra.mxu0 0
        %1205 = vmatprep.subr.bf16.mxu0 0
        %1206 = vmatpush1.bf16.xpose.msra.mxu0 0
        %1207 = vmatprep.subr.bf16.mxu0 0
        %1208 = vmatpush1.bf16.xpose.msra.mxu0 0
        %1209 = vmatprep.subr.bf16.mxu0 0
        %1210 = vmatpush1.bf16.xpose.msra.mxu0 0
        %1211 = vmatprep.subr.bf16.mxu0 0
        %1212 = vmatpush1.bf16.xpose.msra.mxu0 0
        %1213 = vmatprep.subr.bf16.mxu0 0
        %1214 = vmatpush1.bf16.xpose.msra.mxu0 0
        %1215 = vmatprep.subr.bf16.mxu0 0
        %1216 = vmatpush1.bf16.xpose.msra.mxu0 0
        %1217 = vmatprep.subr.bf16.mxu0 0
        %1218 = vmatpush1.bf16.xpose.msra.mxu0 0
        %1219 = vmatprep.mubr.bf16.mxu0 0
        %1220 = vmatmul.mubr.bf16.gmra.mrb[0].mxu0 %v1182
        %v1221 = vpop.f32.mrb[0].mxu0
        %v1222 = vadd.f32 0.0, %v1221
        %v1223 = vpop.f32.mrb[0].mxu0
        %v1224 = vpop.f32.mrb[0].mxu0
        %v1225 = vpop.f32.mrb[0].mxu0
        %1226 = vdwg.mxu0
        %1228 = vrot.lane.b32.xlu0 %v882, 96
        %v1229 = vpop.permute.xlu0 %1228
        %v1231 = vsel %vm886, %v882, 0
        %v1234 = vsel %vm886, %v1229, 0
        %1236 = vmatprep.subr.bf16.mxu0 0
        %1237 = vmatpush1.bf16.xpose.msra.mxu0 %v1234
        %1238 = vmatprep.subr.bf16.mxu0 0
        %1239 = vmatpush1.bf16.xpose.msra.mxu0 0
        %1240 = vmatprep.subr.bf16.mxu0 0
        %1241 = vmatpush1.bf16.xpose.msra.mxu0 0
        %1242 = vmatprep.subr.bf16.mxu0 0
        %1243 = vmatpush1.bf16.xpose.msra.mxu0 0
        %1244 = vmatprep.subr.bf16.mxu0 0
        %1245 = vmatpush1.bf16.xpose.msra.mxu0 0
        %1246 = vmatprep.subr.bf16.mxu0 0
        %1247 = vmatpush1.bf16.xpose.msra.mxu0 0
        %1248 = vmatprep.subr.bf16.mxu0 0
        %1249 = vmatpush1.bf16.xpose.msra.mxu0 0
        %1250 = vmatprep.subr.bf16.mxu0 0
        %1251 = vmatpush1.bf16.xpose.msra.mxu0 0
        %1252 = vmatprep.subr.bf16.mxu0 0
        %1253 = vmatpush1.bf16.xpose.msra.mxu0 0
        %1254 = vmatprep.subr.bf16.mxu0 0
        %1255 = vmatpush1.bf16.xpose.msra.mxu0 0
        %1256 = vmatprep.subr.bf16.mxu0 0
        %1257 = vmatpush1.bf16.xpose.msra.mxu0 0
        %1258 = vmatprep.subr.bf16.mxu0 0
        %1259 = vmatpush1.bf16.xpose.msra.mxu0 0
        %1260 = vmatprep.subr.bf16.mxu0 0
        %1261 = vmatpush1.bf16.xpose.msra.mxu0 0
        %1262 = vmatprep.subr.bf16.mxu0 0
        %1263 = vmatpush1.bf16.xpose.msra.mxu0 0
        %1264 = vmatprep.subr.bf16.mxu0 0
        %1265 = vmatpush1.bf16.xpose.msra.mxu0 0
        %1266 = vmatprep.subr.bf16.mxu0 0
        %1267 = vmatpush1.bf16.xpose.msra.mxu0 0
        %1268 = vmatprep.mubr.bf16.mxu0 0
        %1269 = vmatmul.mubr.bf16.gmra.mrb[0].mxu0 %v1231
        %v1270 = vpop.f32.mrb[0].mxu0
        %v1271 = vadd.f32 0.0, %v1270
        %v1272 = vpop.f32.mrb[0].mxu0
        %v1273 = vpop.f32.mrb[0].mxu0
        %v1274 = vpop.f32.mrb[0].mxu0
        %1275 = vdwg.mxu0
        %v1276 = vsel %vm886, %v928, -inf
        %1277 = vmax.xlane.f32.xlu0 %v1276
        %v1278 = vpop.xlane.xlu0 %1277
        %v1279 = vsel %vm886, %v977, -inf
        %1280 = vmax.xlane.f32.xlu0 %v1279
        %v1281 = vpop.xlane.xlu0 %1280
        %v1282 = vsel %vm886, %v1026, -inf
        %1283 = vmax.xlane.f32.xlu0 %v1282
        %v1284 = vpop.xlane.xlu0 %1283
        %v1285 = vsel %vm886, %v1075, -inf
        %1286 = vmax.xlane.f32.xlu0 %v1285
        %v1287 = vpop.xlane.xlu0 %1286
        %v1288 = vsel %vm886, %v1124, -inf
        %1289 = vmax.xlane.f32.xlu0 %v1288
        %v1290 = vpop.xlane.xlu0 %1289
        %v1291 = vsel %vm886, %v1173, -inf
        %1292 = vmax.xlane.f32.xlu0 %v1291
        %v1293 = vpop.xlane.xlu0 %1292
        %v1294 = vsel %vm886, %v1222, -inf
        %1295 = vmax.xlane.f32.xlu0 %v1294
        %v1296 = vpop.xlane.xlu0 %1295
        %v1297 = vsel %vm886, %v1271, -inf
        %1298 = vmax.xlane.f32.xlu0 %v1297
        %v1299 = vpop.xlane.xlu0 %1298
        %v1300 = vsub.f32 %v928, %v1278
        %v1301 = vsub.f32 %v977, %v1281
        %v1302 = vsub.f32 %v1026, %v1284
        %v1303 = vsub.f32 %v1075, %v1287
        %v1304 = vsub.f32 %v1124, %v1290
        %v1305 = vsub.f32 %v1173, %v1293
        %v1306 = vsub.f32 %v1222, %v1296
        %v1307 = vsub.f32 %v1271, %v1299
        %v1308 = vmul.f32 %v1300, 1.442695
        %v1309 = vpow.pop %v1308
        %v1310 = vmul.f32 %v1301, 1.442695
        %v1311 = vpow.pop %v1310
        %v1312 = vmul.f32 %v1302, 1.442695
        %v1313 = vpow.pop %v1312
        %v1314 = vmul.f32 %v1303, 1.442695
        %v1315 = vpow.pop %v1314
        %v1316 = vmul.f32 %v1304, 1.442695
        %v1317 = vpow.pop %v1316
        %v1318 = vmul.f32 %v1305, 1.442695
        %v1319 = vpow.pop %v1318
        %v1320 = vmul.f32 %v1306, 1.442695
        %v1321 = vpow.pop %v1320
        %v1322 = vmul.f32 %v1307, 1.442695
        %v1323 = vpow.pop %v1322
        %v1324 = vsel %vm886, %v1309, 0.0
        %1325 = vadd.xlane.f32.xlu0 %v1324
        %v1326 = vpop.xlane.xlu0 %1325
        %v1327 = vsel %vm886, %v1311, 0.0
        %1328 = vadd.xlane.f32.xlu0 %v1327
        %v1329 = vpop.xlane.xlu0 %1328
        %v1330 = vsel %vm886, %v1313, 0.0
        %1331 = vadd.xlane.f32.xlu0 %v1330
        %v1332 = vpop.xlane.xlu0 %1331
        %v1333 = vsel %vm886, %v1315, 0.0
        %1334 = vadd.xlane.f32.xlu0 %v1333
        %v1335 = vpop.xlane.xlu0 %1334
        %v1336 = vsel %vm886, %v1317, 0.0
        %1337 = vadd.xlane.f32.xlu0 %v1336
        %v1338 = vpop.xlane.xlu0 %1337
        %v1339 = vsel %vm886, %v1319, 0.0
        %1340 = vadd.xlane.f32.xlu0 %v1339
        %v1341 = vpop.xlane.xlu0 %1340
        %v1342 = vsel %vm886, %v1321, 0.0
        %1343 = vadd.xlane.f32.xlu0 %v1342
        %v1344 = vpop.xlane.xlu0 %1343
        %v1345 = vsel %vm886, %v1323, 0.0
        %1346 = vadd.xlane.f32.xlu0 %v1345
        %v1347 = vpop.xlane.xlu0 %1346
        %v1348 = vrcp.pop %v1326
        %v1349 = vrcp.pop %v1329
        %v1350 = vrcp.pop %v1332
        %v1351 = vrcp.pop %v1335
        %v1352 = vrcp.pop %v1338
        %v1353 = vrcp.pop %v1341
        %v1354 = vrcp.pop %v1344
        %v1355 = vrcp.pop %v1347
        %v1356 = vmul.f32 %v1309, %v1348
        %v1357 = vmul.f32 %v1311, %v1349
        %v1358 = vmul.f32 %v1313, %v1350
        %v1359 = vmul.f32 %v1315, %v1351
        %v1360 = vmul.f32 %v1317, %v1352
        %v1361 = vmul.f32 %v1319, %v1353
        %v1362 = vmul.f32 %v1321, %v1354
        %v1363 = vmul.f32 %v1323, %v1355
        %v1364 = vpack.c.bf16 %v1356, %v1356
        %v1365 = vpack.c.bf16 %v1357, %v1357
        %v1366 = vpack.c.bf16 %v1358, %v1358
        %v1367 = vpack.c.bf16 %v1359, %v1359
        %v1368 = vpack.c.bf16 %v1360, %v1360
        %v1369 = vpack.c.bf16 %v1361, %v1361
        %v1370 = vpack.c.bf16 %v1362, %v1362
        %v1371 = vpack.c.bf16 %v1363, %v1363
        %1372 = vrot.lane.b32.xlu0 %v875, 64
        %v1373 = vpop.permute.xlu0 %1372
        %v1375 = vsel %vm886, %v1364, 0
        %vm1377 = vcmask 1043456
        %v1379 = vsel %vm1377, %v1373, 0
        %1381 = vmatprep.subr.bf16.mxu0 0
        %1382 = vmatpush1.bf16.msra.mxu0 %v1379
        %1383 = vmatprep.subr.bf16.mxu0 0
        %1384 = vmatpush1.bf16.msra.mxu0 0
        %1385 = vmatprep.subr.bf16.mxu0 0
        %1386 = vmatpush1.bf16.msra.mxu0 0
        %1387 = vmatprep.subr.bf16.mxu0 0
        %1388 = vmatpush1.bf16.msra.mxu0 0
        %1389 = vmatprep.subr.bf16.mxu0 0
        %1390 = vmatpush1.bf16.msra.mxu0 0
        %1391 = vmatprep.subr.bf16.mxu0 0
        %1392 = vmatpush1.bf16.msra.mxu0 0
        %1393 = vmatprep.subr.bf16.mxu0 0
        %1394 = vmatpush1.bf16.msra.mxu0 0
        %1395 = vmatprep.subr.bf16.mxu0 0
        %1396 = vmatpush1.bf16.msra.mxu0 0
        %1397 = vmatprep.subr.bf16.mxu0 0
        %1398 = vmatpush1.bf16.msra.mxu0 0
        %1399 = vmatprep.subr.bf16.mxu0 0
        %1400 = vmatpush1.bf16.msra.mxu0 0
        %1401 = vmatprep.subr.bf16.mxu0 0
        %1402 = vmatpush1.bf16.msra.mxu0 0
        %1403 = vmatprep.subr.bf16.mxu0 0
        %1404 = vmatpush1.bf16.msra.mxu0 0
        %1405 = vmatprep.subr.bf16.mxu0 0
        %1406 = vmatpush1.bf16.msra.mxu0 0
        %1407 = vmatprep.subr.bf16.mxu0 0
        %1408 = vmatpush1.bf16.msra.mxu0 0
        %1409 = vmatprep.subr.bf16.mxu0 0
        %1410 = vmatpush1.bf16.msra.mxu0 0
        %1411 = vmatprep.subr.bf16.mxu0 0
        %1412 = vmatpush1.bf16.msra.mxu0 0
        %1413 = vmatprep.mubr.bf16.mxu0 0
        %1414 = vmatmul.mubr.bf16.gmra.mrb[0].mxu0 %v1375
        %v1415 = vpop.f32.mrb[0].mxu0
        %v1416 = vadd.f32 0.0, %v1415
        %v1417 = vpop.f32.mrb[0].mxu0
        %v1418 = vpop.f32.mrb[0].mxu0
        %v1419 = vpop.f32.mrb[0].mxu0
        %1420 = vdwg.mxu0
        %1421 = vrot.lane.b32.xlu0 %v876, 64
        %v1422 = vpop.permute.xlu0 %1421
        %v1424 = vsel %vm886, %v1365, 0
        %v1427 = vsel %vm1377, %v1422, 0
        %1429 = vmatprep.subr.bf16.mxu0 0
        %1430 = vmatpush1.bf16.msra.mxu0 %v1427
        %1431 = vmatprep.subr.bf16.mxu0 0
        %1432 = vmatpush1.bf16.msra.mxu0 0
        %1433 = vmatprep.subr.bf16.mxu0 0
        %1434 = vmatpush1.bf16.msra.mxu0 0
        %1435 = vmatprep.subr.bf16.mxu0 0
        %1436 = vmatpush1.bf16.msra.mxu0 0
        %1437 = vmatprep.subr.bf16.mxu0 0
        %1438 = vmatpush1.bf16.msra.mxu0 0
        %1439 = vmatprep.subr.bf16.mxu0 0
        %1440 = vmatpush1.bf16.msra.mxu0 0
        %1441 = vmatprep.subr.bf16.mxu0 0
        %1442 = vmatpush1.bf16.msra.mxu0 0
        %1443 = vmatprep.subr.bf16.mxu0 0
        %1444 = vmatpush1.bf16.msra.mxu0 0
        %1445 = vmatprep.subr.bf16.mxu0 0
        %1446 = vmatpush1.bf16.msra.mxu0 0
        %1447 = vmatprep.subr.bf16.mxu0 0
        %1448 = vmatpush1.bf16.msra.mxu0 0
        %1449 = vmatprep.subr.bf16.mxu0 0
        %1450 = vmatpush1.bf16.msra.mxu0 0
        %1451 = vmatprep.subr.bf16.mxu0 0
        %1452 = vmatpush1.bf16.msra.mxu0 0
        %1453 = vmatprep.subr.bf16.mxu0 0
        %1454 = vmatpush1.bf16.msra.mxu0 0
        %1455 = vmatprep.subr.bf16.mxu0 0
        %1456 = vmatpush1.bf16.msra.mxu0 0
        %1457 = vmatprep.subr.bf16.mxu0 0
        %1458 = vmatpush1.bf16.msra.mxu0 0
        %1459 = vmatprep.subr.bf16.mxu0 0
        %1460 = vmatpush1.bf16.msra.mxu0 0
        %1461 = vmatprep.mubr.bf16.mxu0 0
        %1462 = vmatmul.mubr.bf16.gmra.mrb[0].mxu0 %v1424
        %v1463 = vpop.f32.mrb[0].mxu0
        %v1464 = vadd.f32 0.0, %v1463
        %v1465 = vpop.f32.mrb[0].mxu0
        %v1466 = vpop.f32.mrb[0].mxu0
        %v1467 = vpop.f32.mrb[0].mxu0
        %1468 = vdwg.mxu0
        %1469 = vrot.lane.b32.xlu0 %v877, 64
        %v1470 = vpop.permute.xlu0 %1469
        %v1472 = vsel %vm886, %v1366, 0
        %v1475 = vsel %vm1377, %v1470, 0
        %1477 = vmatprep.subr.bf16.mxu0 0
        %1478 = vmatpush1.bf16.msra.mxu0 %v1475
        %1479 = vmatprep.subr.bf16.mxu0 0
        %1480 = vmatpush1.bf16.msra.mxu0 0
        %1481 = vmatprep.subr.bf16.mxu0 0
        %1482 = vmatpush1.bf16.msra.mxu0 0
        %1483 = vmatprep.subr.bf16.mxu0 0
        %1484 = vmatpush1.bf16.msra.mxu0 0
        %1485 = vmatprep.subr.bf16.mxu0 0
        %1486 = vmatpush1.bf16.msra.mxu0 0
        %1487 = vmatprep.subr.bf16.mxu0 0
        %1488 = vmatpush1.bf16.msra.mxu0 0
        %1489 = vmatprep.subr.bf16.mxu0 0
        %1490 = vmatpush1.bf16.msra.mxu0 0
        %1491 = vmatprep.subr.bf16.mxu0 0
        %1492 = vmatpush1.bf16.msra.mxu0 0
        %1493 = vmatprep.subr.bf16.mxu0 0
        %1494 = vmatpush1.bf16.msra.mxu0 0
        %1495 = vmatprep.subr.bf16.mxu0 0
        %1496 = vmatpush1.bf16.msra.mxu0 0
        %1497 = vmatprep.subr.bf16.mxu0 0
        %1498 = vmatpush1.bf16.msra.mxu0 0
        %1499 = vmatprep.subr.bf16.mxu0 0
        %1500 = vmatpush1.bf16.msra.mxu0 0
        %1501 = vmatprep.subr.bf16.mxu0 0
        %1502 = vmatpush1.bf16.msra.mxu0 0
        %1503 = vmatprep.subr.bf16.mxu0 0
        %1504 = vmatpush1.bf16.msra.mxu0 0
        %1505 = vmatprep.subr.bf16.mxu0 0
        %1506 = vmatpush1.bf16.msra.mxu0 0
        %1507 = vmatprep.subr.bf16.mxu0 0
        %1508 = vmatpush1.bf16.msra.mxu0 0
        %1509 = vmatprep.mubr.bf16.mxu0 0
        %1510 = vmatmul.mubr.bf16.gmra.mrb[0].mxu0 %v1472
        %v1511 = vpop.f32.mrb[0].mxu0
        %v1512 = vadd.f32 0.0, %v1511
        %v1513 = vpop.f32.mrb[0].mxu0
        %v1514 = vpop.f32.mrb[0].mxu0
        %v1515 = vpop.f32.mrb[0].mxu0
        %1516 = vdwg.mxu0
        %1517 = vrot.lane.b32.xlu0 %v878, 64
        %v1518 = vpop.permute.xlu0 %1517
        %v1520 = vsel %vm886, %v1367, 0
        %v1523 = vsel %vm1377, %v1518, 0
        %1525 = vmatprep.subr.bf16.mxu0 0
        %1526 = vmatpush1.bf16.msra.mxu0 %v1523
        %1527 = vmatprep.subr.bf16.mxu0 0
        %1528 = vmatpush1.bf16.msra.mxu0 0
        %1529 = vmatprep.subr.bf16.mxu0 0
        %1530 = vmatpush1.bf16.msra.mxu0 0
        %1531 = vmatprep.subr.bf16.mxu0 0
        %1532 = vmatpush1.bf16.msra.mxu0 0
        %1533 = vmatprep.subr.bf16.mxu0 0
        %1534 = vmatpush1.bf16.msra.mxu0 0
        %1535 = vmatprep.subr.bf16.mxu0 0
        %1536 = vmatpush1.bf16.msra.mxu0 0
        %1537 = vmatprep.subr.bf16.mxu0 0
        %1538 = vmatpush1.bf16.msra.mxu0 0
        %1539 = vmatprep.subr.bf16.mxu0 0
        %1540 = vmatpush1.bf16.msra.mxu0 0
        %1541 = vmatprep.subr.bf16.mxu0 0
        %1542 = vmatpush1.bf16.msra.mxu0 0
        %1543 = vmatprep.subr.bf16.mxu0 0
        %1544 = vmatpush1.bf16.msra.mxu0 0
        %1545 = vmatprep.subr.bf16.mxu0 0
        %1546 = vmatpush1.bf16.msra.mxu0 0
        %1547 = vmatprep.subr.bf16.mxu0 0
        %1548 = vmatpush1.bf16.msra.mxu0 0
        %1549 = vmatprep.subr.bf16.mxu0 0
        %1550 = vmatpush1.bf16.msra.mxu0 0
        %1551 = vmatprep.subr.bf16.mxu0 0
        %1552 = vmatpush1.bf16.msra.mxu0 0
        %1553 = vmatprep.subr.bf16.mxu0 0
        %1554 = vmatpush1.bf16.msra.mxu0 0
        %1555 = vmatprep.subr.bf16.mxu0 0
        %1556 = vmatpush1.bf16.msra.mxu0 0
        %1557 = vmatprep.mubr.bf16.mxu0 0
        %1558 = vmatmul.mubr.bf16.gmra.mrb[0].mxu0 %v1520
        %v1559 = vpop.f32.mrb[0].mxu0
        %v1560 = vadd.f32 0.0, %v1559
        %v1561 = vpop.f32.mrb[0].mxu0
        %v1562 = vpop.f32.mrb[0].mxu0
        %v1563 = vpop.f32.mrb[0].mxu0
        %1564 = vdwg.mxu0
        %1565 = vrot.lane.b32.xlu0 %v879, 64
        %v1566 = vpop.permute.xlu0 %1565
        %v1568 = vsel %vm886, %v1368, 0
        %v1571 = vsel %vm1377, %v1566, 0
        %1573 = vmatprep.subr.bf16.mxu0 0
        %1574 = vmatpush1.bf16.msra.mxu0 %v1571
        %1575 = vmatprep.subr.bf16.mxu0 0
        %1576 = vmatpush1.bf16.msra.mxu0 0
        %1577 = vmatprep.subr.bf16.mxu0 0
        %1578 = vmatpush1.bf16.msra.mxu0 0
        %1579 = vmatprep.subr.bf16.mxu0 0
        %1580 = vmatpush1.bf16.msra.mxu0 0
        %1581 = vmatprep.subr.bf16.mxu0 0
        %1582 = vmatpush1.bf16.msra.mxu0 0
        %1583 = vmatprep.subr.bf16.mxu0 0
        %1584 = vmatpush1.bf16.msra.mxu0 0
        %1585 = vmatprep.subr.bf16.mxu0 0
        %1586 = vmatpush1.bf16.msra.mxu0 0
        %1587 = vmatprep.subr.bf16.mxu0 0
        %1588 = vmatpush1.bf16.msra.mxu0 0
        %1589 = vmatprep.subr.bf16.mxu0 0
        %1590 = vmatpush1.bf16.msra.mxu0 0
        %1591 = vmatprep.subr.bf16.mxu0 0
        %1592 = vmatpush1.bf16.msra.mxu0 0
        %1593 = vmatprep.subr.bf16.mxu0 0
        %1594 = vmatpush1.bf16.msra.mxu0 0
        %1595 = vmatprep.subr.bf16.mxu0 0
        %1596 = vmatpush1.bf16.msra.mxu0 0
        %1597 = vmatprep.subr.bf16.mxu0 0
        %1598 = vmatpush1.bf16.msra.mxu0 0
        %1599 = vmatprep.subr.bf16.mxu0 0
        %1600 = vmatpush1.bf16.msra.mxu0 0
        %1601 = vmatprep.subr.bf16.mxu0 0
        %1602 = vmatpush1.bf16.msra.mxu0 0
        %1603 = vmatprep.subr.bf16.mxu0 0
        %1604 = vmatpush1.bf16.msra.mxu0 0
        %1605 = vmatprep.mubr.bf16.mxu0 0
        %1606 = vmatmul.mubr.bf16.gmra.mrb[0].mxu0 %v1568
        %v1607 = vpop.f32.mrb[0].mxu0
        %v1608 = vadd.f32 0.0, %v1607
        %v1609 = vpop.f32.mrb[0].mxu0
        %v1610 = vpop.f32.mrb[0].mxu0
        %v1611 = vpop.f32.mrb[0].mxu0
        %1612 = vdwg.mxu0
        %1613 = vrot.lane.b32.xlu0 %v880, 64
        %v1614 = vpop.permute.xlu0 %1613
        %v1616 = vsel %vm886, %v1369, 0
        %v1619 = vsel %vm1377, %v1614, 0
        %1621 = vmatprep.subr.bf16.mxu0 0
        %1622 = vmatpush1.bf16.msra.mxu0 %v1619
        %1623 = vmatprep.subr.bf16.mxu0 0
        %1624 = vmatpush1.bf16.msra.mxu0 0
        %1625 = vmatprep.subr.bf16.mxu0 0
        %1626 = vmatpush1.bf16.msra.mxu0 0
        %1627 = vmatprep.subr.bf16.mxu0 0
        %1628 = vmatpush1.bf16.msra.mxu0 0
        %1629 = vmatprep.subr.bf16.mxu0 0
        %1630 = vmatpush1.bf16.msra.mxu0 0
        %1631 = vmatprep.subr.bf16.mxu0 0
        %1632 = vmatpush1.bf16.msra.mxu0 0
        %1633 = vmatprep.subr.bf16.mxu0 0
        %1634 = vmatpush1.bf16.msra.mxu0 0
        %1635 = vmatprep.subr.bf16.mxu0 0
        %1636 = vmatpush1.bf16.msra.mxu0 0
        %1637 = vmatprep.subr.bf16.mxu0 0
        %1638 = vmatpush1.bf16.msra.mxu0 0
        %1639 = vmatprep.subr.bf16.mxu0 0
        %1640 = vmatpush1.bf16.msra.mxu0 0
        %1641 = vmatprep.subr.bf16.mxu0 0
        %1642 = vmatpush1.bf16.msra.mxu0 0
        %1643 = vmatprep.subr.bf16.mxu0 0
        %1644 = vmatpush1.bf16.msra.mxu0 0
        %1645 = vmatprep.subr.bf16.mxu0 0
        %1646 = vmatpush1.bf16.msra.mxu0 0
        %1647 = vmatprep.subr.bf16.mxu0 0
        %1648 = vmatpush1.bf16.msra.mxu0 0
        %1649 = vmatprep.subr.bf16.mxu0 0
        %1650 = vmatpush1.bf16.msra.mxu0 0
        %1651 = vmatprep.subr.bf16.mxu0 0
        %1652 = vmatpush1.bf16.msra.mxu0 0
        %1653 = vmatprep.mubr.bf16.mxu0 0
        %1654 = vmatmul.mubr.bf16.gmra.mrb[0].mxu0 %v1616
        %v1655 = vpop.f32.mrb[0].mxu0
        %v1656 = vadd.f32 0.0, %v1655
        %v1657 = vpop.f32.mrb[0].mxu0
        %v1658 = vpop.f32.mrb[0].mxu0
        %v1659 = vpop.f32.mrb[0].mxu0
        %1660 = vdwg.mxu0
        %1661 = vrot.lane.b32.xlu0 %v881, 64
        %v1662 = vpop.permute.xlu0 %1661
        %v1664 = vsel %vm886, %v1370, 0
        %v1667 = vsel %vm1377, %v1662, 0
        %1669 = vmatprep.subr.bf16.mxu0 0
        %1670 = vmatpush1.bf16.msra.mxu0 %v1667
        %1671 = vmatprep.subr.bf16.mxu0 0
        %1672 = vmatpush1.bf16.msra.mxu0 0
        %1673 = vmatprep.subr.bf16.mxu0 0
        %1674 = vmatpush1.bf16.msra.mxu0 0
        %1675 = vmatprep.subr.bf16.mxu0 0
        %1676 = vmatpush1.bf16.msra.mxu0 0
        %1677 = vmatprep.subr.bf16.mxu0 0
        %1678 = vmatpush1.bf16.msra.mxu0 0
        %1679 = vmatprep.subr.bf16.mxu0 0
        %1680 = vmatpush1.bf16.msra.mxu0 0
        %1681 = vmatprep.subr.bf16.mxu0 0
        %1682 = vmatpush1.bf16.msra.mxu0 0
        %1683 = vmatprep.subr.bf16.mxu0 0
        %1684 = vmatpush1.bf16.msra.mxu0 0
        %1685 = vmatprep.subr.bf16.mxu0 0
        %1686 = vmatpush1.bf16.msra.mxu0 0
        %1687 = vmatprep.subr.bf16.mxu0 0
        %1688 = vmatpush1.bf16.msra.mxu0 0
        %1689 = vmatprep.subr.bf16.mxu0 0
        %1690 = vmatpush1.bf16.msra.mxu0 0
        %1691 = vmatprep.subr.bf16.mxu0 0
        %1692 = vmatpush1.bf16.msra.mxu0 0
        %1693 = vmatprep.subr.bf16.mxu0 0
        %1694 = vmatpush1.bf16.msra.mxu0 0
        %1695 = vmatprep.subr.bf16.mxu0 0
        %1696 = vmatpush1.bf16.msra.mxu0 0
        %1697 = vmatprep.subr.bf16.mxu0 0
        %1698 = vmatpush1.bf16.msra.mxu0 0
        %1699 = vmatprep.subr.bf16.mxu0 0
        %1700 = vmatpush1.bf16.msra.mxu0 0
        %1701 = vmatprep.mubr.bf16.mxu0 0
        %1702 = vmatmul.mubr.bf16.gmra.mrb[0].mxu0 %v1664
        %v1703 = vpop.f32.mrb[0].mxu0
        %v1704 = vadd.f32 0.0, %v1703
        %v1705 = vpop.f32.mrb[0].mxu0
        %v1706 = vpop.f32.mrb[0].mxu0
        %v1707 = vpop.f32.mrb[0].mxu0
        %1708 = vdwg.mxu0
        %1709 = vrot.lane.b32.xlu0 %v882, 64
        %v1710 = vpop.permute.xlu0 %1709
        %v1712 = vsel %vm886, %v1371, 0
        %v1715 = vsel %vm1377, %v1710, 0
        %1717 = vmatprep.subr.bf16.mxu0 0
        %1718 = vmatpush1.bf16.msra.mxu0 %v1715
        %1719 = vmatprep.subr.bf16.mxu0 0
        %1720 = vmatpush1.bf16.msra.mxu0 0
        %1721 = vmatprep.subr.bf16.mxu0 0
        %1722 = vmatpush1.bf16.msra.mxu0 0
        %1723 = vmatprep.subr.bf16.mxu0 0
        %1724 = vmatpush1.bf16.msra.mxu0 0
        %1725 = vmatprep.subr.bf16.mxu0 0
        %1726 = vmatpush1.bf16.msra.mxu0 0
        %1727 = vmatprep.subr.bf16.mxu0 0
        %1728 = vmatpush1.bf16.msra.mxu0 0
        %1729 = vmatprep.subr.bf16.mxu0 0
        %1730 = vmatpush1.bf16.msra.mxu0 0
        %1731 = vmatprep.subr.bf16.mxu0 0
        %1732 = vmatpush1.bf16.msra.mxu0 0
        %1733 = vmatprep.subr.bf16.mxu0 0
        %1734 = vmatpush1.bf16.msra.mxu0 0
        %1735 = vmatprep.subr.bf16.mxu0 0
        %1736 = vmatpush1.bf16.msra.mxu0 0
        %1737 = vmatprep.subr.bf16.mxu0 0
        %1738 = vmatpush1.bf16.msra.mxu0 0
        %1739 = vmatprep.subr.bf16.mxu0 0
        %1740 = vmatpush1.bf16.msra.mxu0 0
        %1741 = vmatprep.subr.bf16.mxu0 0
        %1742 = vmatpush1.bf16.msra.mxu0 0
        %1743 = vmatprep.subr.bf16.mxu0 0
        %1744 = vmatpush1.bf16.msra.mxu0 0
        %1745 = vmatprep.subr.bf16.mxu0 0
        %1746 = vmatpush1.bf16.msra.mxu0 0
        %1747 = vmatprep.subr.bf16.mxu0 0
        %1748 = vmatpush1.bf16.msra.mxu0 0
        %1749 = vmatprep.mubr.bf16.mxu0 0
        %1750 = vmatmul.mubr.bf16.gmra.mrb[0].mxu0 %v1712
        %v1751 = vpop.f32.mrb[0].mxu0
        %v1752 = vadd.f32 0.0, %v1751
        %v1753 = vpop.f32.mrb[0].mxu0
        %v1754 = vpop.f32.mrb[0].mxu0
        %v1755 = vpop.f32.mrb[0].mxu0
        %1756 = vdwg.mxu0
        %1759 = vrot.lane.b32.xlu0 %v1512, 8
        %v1760 = vpop.permute.xlu0 %1759
        %1761 = vrot.lane.b32.xlu0 %v1560, 8
        %v1762 = vpop.permute.xlu0 %1761
        %1767 = vrot.lane.b32.xlu0 %v1608, 16
        %v1768 = vpop.permute.xlu0 %1767
        %1769 = vrot.lane.b32.xlu0 %v1656, 16
        %v1770 = vpop.permute.xlu0 %1769
        %1775 = vrot.lane.b32.xlu0 %v1704, 24
        %v1776 = vpop.permute.xlu0 %1775
        %1777 = vrot.lane.b32.xlu0 %v1752, 24
        %v1778 = vpop.permute.xlu0 %1777
        %v1781 = vsel %vm886, %v1416, %v1760
        %v1782 = vsel %vm886, %v1464, %v1762
        %vm1783 = vcmask 130048
        %v1784 = vsel %vm1783, %v1781, %v1768
        %v1785 = vsel %vm1783, %v1782, %v1770
        %vm1786 = vcmask 195584
        %v1787 = vsel %vm1786, %v1784, %v1776
        %v1788 = vsel %vm1786, %v1785, %v1778
        %v1789 = vpack.c.bf16 %v1788, %v1787
        %v1790 = vld [vmem:[%s692] sm:$0xf]
        %v1791 = vld [vmem:[%s692 + $0x4] sm:$0xf]
        %v1792 = vld [vmem:[%s692 + $0x8] sm:$0xf]
        %v1793 = vld [vmem:[%s692 + $0xc] sm:$0xf]
        %v1794 = vld [vmem:[%s695] sm:$0x1]
        %v1796 = vlaneseq
        %v1797 = vshrl.u32 %v1796, 7
        %v1798 = vsub.s32 0, %v1797
        %v1799 = vrot.slane %v1794, %v1798
        %v1805 = vunpack.c.l.b16 %v1790
        %v1806 = vunpack.c.l.b16 %v1791
        %v1807 = vunpack.c.l.b16 %v1792
        %v1808 = vunpack.c.l.b16 %v1793
        %v1809 = vpack.c.b16 %v1806, %v1805
        %v1810 = vpack.c.b16 %v1808, %v1807
        %v1814 = vsel %vm810, %v1789, 0
        %1816 = vmatprep.subr.bf16.mxu0 0
        %1817 = vmatpush1.bf16.msra.mxu0 %v1809
        %1818 = vmatprep.subr.bf16.mxu0 0
        %1819 = vmatpush1.bf16.msra.mxu0 %v1810
        %1820 = vmatprep.subr.bf16.mxu0 0
        %1821 = vmatpush1.bf16.msra.mxu0 0
        %1822 = vmatprep.subr.bf16.mxu0 0
        %1823 = vmatpush1.bf16.msra.mxu0 0
        %1824 = vmatprep.subr.bf16.mxu0 0
        %1825 = vmatpush1.bf16.msra.mxu0 0
        %1826 = vmatprep.subr.bf16.mxu0 0
        %1827 = vmatpush1.bf16.msra.mxu0 0
        %1828 = vmatprep.subr.bf16.mxu0 0
        %1829 = vmatpush1.bf16.msra.mxu0 0
        %1830 = vmatprep.subr.bf16.mxu0 0
        %1831 = vmatpush1.bf16.msra.mxu0 0
        %1832 = vmatprep.subr.bf16.mxu0 0
        %1833 = vmatpush1.bf16.msra.mxu0 0
        %1834 = vmatprep.subr.bf16.mxu0 0
        %1835 = vmatpush1.bf16.msra.mxu0 0
        %1836 = vmatprep.subr.bf16.mxu0 0
        %1837 = vmatpush1.bf16.msra.mxu0 0
        %1838 = vmatprep.subr.bf16.mxu0 0
        %1839 = vmatpush1.bf16.msra.mxu0 0
        %1840 = vmatprep.subr.bf16.mxu0 0
        %1841 = vmatpush1.bf16.msra.mxu0 0
        %1842 = vmatprep.subr.bf16.mxu0 0
        %1843 = vmatpush1.bf16.msra.mxu0 0
        %1844 = vmatprep.subr.bf16.mxu0 0
        %1845 = vmatpush1.bf16.msra.mxu0 0
        %1846 = vmatprep.subr.bf16.mxu0 0
        %1847 = vmatpush1.bf16.msra.mxu0 0
        %1848 = vmatprep.mubr.bf16.mxu0 0
        %1849 = vmatmul.mubr.bf16.gmra.mrb[0].mxu0 %v1814
        %v1850 = vpop.f32.mrb[0].mxu0
        %v1851 = vadd.f32 %v1799, %v1850
        %v1852 = vpop.f32.mrb[0].mxu0
        %v1853 = vpop.f32.mrb[0].mxu0
        %v1854 = vadd.f32 %v1799, %v1853
        %v1855 = vpop.f32.mrb[0].mxu0
        %1856 = vdwg.mxu0
        %v1857 = vadd.f32 %v784, %v1851
        %v1858 = vadd.f32 %v785, %v1854
        %v1859 = vld [vmem:[%s698] sm:$0x1]
        %v1860 = vld [vmem:[%s701] sm:$0x1]
        %v1861 = vsel %vm810, %v1857, 0.0
        %1862 = vadd.xlane.f32.xlu0 %v1861
        %v1863 = vpop.xlane.xlu0 %1862
        %v1864 = vsel %vm810, %v1858, 0.0
        %1865 = vadd.xlane.f32.xlu0 %v1864
        %v1866 = vpop.xlane.xlu0 %1865
        %v1867 = vrcp.pop 32.0
        %v1868 = vmul.f32 %v1863, %v1867
        %v1869 = vmul.f32 %v1866, %v1867
        %v1870 = vsub.f32 %v1857, %v1868
        %v1871 = vsub.f32 %v1858, %v1869
        %v1872 = vmul.f32 %v1870, %v1870
        %v1873 = vmul.f32 %v1871, %v1871
        %v1874 = vsel %vm810, %v1872, 0.0
        %1875 = vadd.xlane.f32.xlu0 %v1874
        %v1876 = vpop.xlane.xlu0 %1875
        %v1877 = vsel %vm810, %v1873, 0.0
        %1878 = vadd.xlane.f32.xlu0 %v1877
        %v1879 = vpop.xlane.xlu0 %1878
        %v1880 = vmul.f32 %v1876, %v1867
        %v1881 = vmul.f32 %v1879, %v1867
        %v1882 = vadd.f32 %v1880, 1e-05
        %v1883 = vadd.f32 %v1881, 1e-05
        %v1884 = vrsqrt.pop %v1882
        %v1885 = vrsqrt.pop %v1883
        %v1886 = vmul.f32 %v1870, %v1884
        %v1887 = vmul.f32 %v1871, %v1885
        %v1889 = vlaneseq
        %v1890 = vshrl.u32 %v1889, 7
        %v1891 = vsub.s32 0, %v1890
        %v1892 = vrot.slane %v1859, %v1891
        %v1894 = vmul.f32 %v1886, %v1892
        %v1895 = vmul.f32 %v1887, %v1892
        %v1897 = vlaneseq
        %v1898 = vshrl.u32 %v1897, 7
        %v1899 = vsub.s32 0, %v1898
        %v1900 = vrot.slane %v1860, %v1899
        %v1902 = vadd.f32 %v1894, %v1900
        %v1903 = vadd.f32 %v1895, %v1900
        %v1904 = vpack.c.bf16 %v1903, %v1902
        %v1905 = vld [vmem:[%s712] sm:$0xf]
        %v1906 = vld [vmem:[%s712 + $0x4] sm:$0xf]
        %v1907 = vld [vmem:[%s712 + $0x8] sm:$0xf]
        %v1908 = vld [vmem:[%s712 + $0xc] sm:$0xf]
        %v1909 = vld [vmem:[%s585] sm:$0x1]
        %v1911 = vlaneseq
        %v1912 = vshrl.u32 %v1911, 7
        %v1913 = vsub.s32 0, %v1912
        %v1914 = vrot.slane %v1909, %v1913
        %v1920 = vunpack.c.l.b16 %v1905
        %v1921 = vunpack.c.l.b16 %v1906
        %v1922 = vunpack.c.l.b16 %v1907
        %v1923 = vunpack.c.l.b16 %v1908
        %v1924 = vpack.c.b16 %v1921, %v1920
        %v1925 = vpack.c.b16 %v1923, %v1922
        %v1929 = vsel %vm810, %v1904, 0
        %1931 = vmatprep.subr.bf16.mxu0 0
        %1932 = vmatpush1.bf16.msra.mxu0 %v1924
        %1933 = vmatprep.subr.bf16.mxu0 0
        %1934 = vmatpush1.bf16.msra.mxu0 %v1925
        %1935 = vmatprep.subr.bf16.mxu0 0
        %1936 = vmatpush1.bf16.msra.mxu0 0
        %1937 = vmatprep.subr.bf16.mxu0 0
        %1938 = vmatpush1.bf16.msra.mxu0 0
        %1939 = vmatprep.subr.bf16.mxu0 0
        %1940 = vmatpush1.bf16.msra.mxu0 0
        %1941 = vmatprep.subr.bf16.mxu0 0
        %1942 = vmatpush1.bf16.msra.mxu0 0
        %1943 = vmatprep.subr.bf16.mxu0 0
        %1944 = vmatpush1.bf16.msra.mxu0 0
        %1945 = vmatprep.subr.bf16.mxu0 0
        %1946 = vmatpush1.bf16.msra.mxu0 0
        %1947 = vmatprep.subr.bf16.mxu0 0
        %1948 = vmatpush1.bf16.msra.mxu0 0
        %1949 = vmatprep.subr.bf16.mxu0 0
        %1950 = vmatpush1.bf16.msra.mxu0 0
        %1951 = vmatprep.subr.bf16.mxu0 0
        %1952 = vmatpush1.bf16.msra.mxu0 0
        %1953 = vmatprep.subr.bf16.mxu0 0
        %1954 = vmatpush1.bf16.msra.mxu0 0
        %1955 = vmatprep.subr.bf16.mxu0 0
        %1956 = vmatpush1.bf16.msra.mxu0 0
        %1957 = vmatprep.subr.bf16.mxu0 0
        %1958 = vmatpush1.bf16.msra.mxu0 0
        %1959 = vmatprep.subr.bf16.mxu0 0
        %1960 = vmatpush1.bf16.msra.mxu0 0
        %1961 = vmatprep.subr.bf16.mxu0 0
        %1962 = vmatpush1.bf16.msra.mxu0 0
        %1963 = vmatprep.mubr.bf16.mxu0 0
        %1964 = vmatmul.mubr.bf16.gmra.mrb[0].mxu0 %v1929
        %v1965 = vpop.f32.mrb[0].mxu0
        %v1966 = vadd.f32 %v1914, %v1965
        %v1967 = vpop.f32.mrb[0].mxu0
        %v1968 = vpop.f32.mrb[0].mxu0
        %v1969 = vadd.f32 %v1914, %v1968
        %v1970 = vpop.f32.mrb[0].mxu0
        %1971 = vdwg.mxu0
        %v1972 = vmax.f32 %v1966, 0.0
        %v1973 = vmax.f32 %v1969, 0.0
        %v1974 = vpack.c.bf16 %v1973, %v1972
        %v1975 = vld [vmem:[%s717] sm:$0xf]
        %v1976 = vld [vmem:[%s717 + $0x4] sm:$0xf]
        %v1977 = vld [vmem:[%s717 + $0x8] sm:$0xf]
        %v1978 = vld [vmem:[%s717 + $0xc] sm:$0xf]
        %v1979 = vld [vmem:[%s717 + $0x10] sm:$0xf]
        %v1980 = vld [vmem:[%s717 + $0x14] sm:$0xf]
        %v1981 = vld [vmem:[%s717 + $0x18] sm:$0xf]
        %v1982 = vld [vmem:[%s717 + $0x1c] sm:$0xf]
        %v1983 = vld [vmem:[%s593] sm:$0x1]
        %v1985 = vlaneseq
        %v1986 = vshrl.u32 %v1985, 7
        %v1987 = vsub.s32 0, %v1986
        %v1988 = vrot.slane %v1983, %v1987
        %v1998 = vunpack.c.l.b16 %v1975
        %v1999 = vunpack.c.l.b16 %v1976
        %v2000 = vunpack.c.l.b16 %v1977
        %v2001 = vunpack.c.l.b16 %v1978
        %v2002 = vunpack.c.l.b16 %v1979
        %v2003 = vunpack.c.l.b16 %v1980
        %v2004 = vunpack.c.l.b16 %v1981
        %v2005 = vunpack.c.l.b16 %v1982
        %v2006 = vpack.c.b16 %v1999, %v1998
        %v2007 = vpack.c.b16 %v2001, %v2000
        %v2008 = vpack.c.b16 %v2003, %v2002
        %v2009 = vpack.c.b16 %v2005, %v2004
        %vm2014 = vcmask 523264
        %v2016 = vsel %vm2014, %v1974, 0
        %2018 = vmatprep.subr.bf16.mxu0 0
        %2019 = vmatpush1.bf16.msra.mxu0 %v2006
        %2020 = vmatprep.subr.bf16.mxu0 0
        %2021 = vmatpush1.bf16.msra.mxu0 %v2007
        %2022 = vmatprep.subr.bf16.mxu0 0
        %2023 = vmatpush1.bf16.msra.mxu0 %v2008
        %2024 = vmatprep.subr.bf16.mxu0 0
        %2025 = vmatpush1.bf16.msra.mxu0 %v2009
        %2026 = vmatprep.subr.bf16.mxu0 0
        %2027 = vmatpush1.bf16.msra.mxu0 0
        %2028 = vmatprep.subr.bf16.mxu0 0
        %2029 = vmatpush1.bf16.msra.mxu0 0
        %2030 = vmatprep.subr.bf16.mxu0 0
        %2031 = vmatpush1.bf16.msra.mxu0 0
        %2032 = vmatprep.subr.bf16.mxu0 0
        %2033 = vmatpush1.bf16.msra.mxu0 0
        %2034 = vmatprep.subr.bf16.mxu0 0
        %2035 = vmatpush1.bf16.msra.mxu0 0
        %2036 = vmatprep.subr.bf16.mxu0 0
        %2037 = vmatpush1.bf16.msra.mxu0 0
        %2038 = vmatprep.subr.bf16.mxu0 0
        %2039 = vmatpush1.bf16.msra.mxu0 0
        %2040 = vmatprep.subr.bf16.mxu0 0
        %2041 = vmatpush1.bf16.msra.mxu0 0
        %2042 = vmatprep.subr.bf16.mxu0 0
        %2043 = vmatpush1.bf16.msra.mxu0 0
        %2044 = vmatprep.subr.bf16.mxu0 0
        %2045 = vmatpush1.bf16.msra.mxu0 0
        %2046 = vmatprep.subr.bf16.mxu0 0
        %2047 = vmatpush1.bf16.msra.mxu0 0
        %2048 = vmatprep.subr.bf16.mxu0 0
        %2049 = vmatpush1.bf16.msra.mxu0 0
        %2050 = vmatprep.mubr.bf16.mxu0 0
        %2051 = vmatmul.mubr.bf16.gmra.mrb[0].mxu0 %v2016
        %v2052 = vpop.f32.mrb[0].mxu0
        %v2053 = vadd.f32 %v1988, %v2052
        %v2054 = vpop.f32.mrb[0].mxu0
        %v2055 = vpop.f32.mrb[0].mxu0
        %v2056 = vadd.f32 %v1988, %v2055
        %v2057 = vpop.f32.mrb[0].mxu0
        %2058 = vdwg.mxu0
        %v2059 = vadd.f32 %v1902, %v2053
        %v2060 = vadd.f32 %v1903, %v2056
        %v2061 = vld [vmem:[%s704] sm:$0x1]
        %v2062 = vld [vmem:[%s707] sm:$0x1]
        %v2063 = vsel %vm810, %v2059, 0.0
        %2064 = vadd.xlane.f32.xlu0 %v2063
        %v2065 = vpop.xlane.xlu0 %2064
        %v2066 = vsel %vm810, %v2060, 0.0
        %2067 = vadd.xlane.f32.xlu0 %v2066
        %v2068 = vpop.xlane.xlu0 %2067
        %v2069 = vmul.f32 %v2065, %v1867
        %v2070 = vmul.f32 %v2068, %v1867
        %v2071 = vsub.f32 %v2059, %v2069
        %v2072 = vsub.f32 %v2060, %v2070
        %v2073 = vmul.f32 %v2071, %v2071
        %v2074 = vmul.f32 %v2072, %v2072
        %v2075 = vsel %vm810, %v2073, 0.0
        %2076 = vadd.xlane.f32.xlu0 %v2075
        %v2077 = vpop.xlane.xlu0 %2076
        %v2078 = vsel %vm810, %v2074, 0.0
        %2079 = vadd.xlane.f32.xlu0 %v2078
        %v2080 = vpop.xlane.xlu0 %2079
        %v2081 = vmul.f32 %v2077, %v1867
        %v2082 = vmul.f32 %v2080, %v1867
        %v2083 = vadd.f32 %v2081, 1e-05
        %v2084 = vadd.f32 %v2082, 1e-05
        %v2085 = vrsqrt.pop %v2083
        %v2086 = vrsqrt.pop %v2084
        %v2087 = vmul.f32 %v2071, %v2085
        %v2088 = vmul.f32 %v2072, %v2086
        %v2090 = vlaneseq
        %v2091 = vshrl.u32 %v2090, 7
        %v2092 = vsub.s32 0, %v2091
        %v2093 = vrot.slane %v2061, %v2092
        %v2095 = vmul.f32 %v2087, %v2093
        %v2096 = vmul.f32 %v2088, %v2093
        %v2098 = vlaneseq
        %v2099 = vshrl.u32 %v2098, 7
        %v2100 = vsub.s32 0, %v2099
        %v2101 = vrot.slane %v2062, %v2100
        %v2103 = vadd.f32 %v2095, %v2101
        %v2104 = vadd.f32 %v2096, %v2101
        %2105 = vst.msk [vmem:[#allocation2] sm:$0xff] %vm810, %v2103
        %2106 = vst.msk [vmem:[#allocation2 + $0x8] sm:$0xff] %vm810, %v2104
        %p2107 = scmp.eq.s32.totalorder %s32, 1
        // Predicated region
        $region101: #{entity_context_encoder_forward.1} parent=79 // pred_check
          %p2108 = pneg %p2107
        $region102: #{entity_context_encoder_forward.1} parent=79 // pred_check_branch
          %2110 = sbr.rel (%p2108) target = $region104
        $region103: #{entity_context_encoder_forward.1} parent=79 // pred_region
          %v2111 = vld [vmem:[%s13] sm:$0x1]
          %v2112 = vld [vmem:[#allocation9] sm:$0x1]
          %v2113 = vsel %vm810, %v2103, 0.0
          %2114 = vadd.xlane.f32.xlu0 %v2113
          %v2115 = vpop.xlane.xlu0 %2114
          %v2116 = vsel %vm810, %v2104, 0.0
          %2117 = vadd.xlane.f32.xlu0 %v2116
          %v2118 = vpop.xlane.xlu0 %2117
          %v2119 = vmul.f32 %v2115, %v1867
          %v2120 = vmul.f32 %v2118, %v1867
          %v2121 = vsub.f32 %v2103, %v2119
          %v2122 = vsub.f32 %v2104, %v2120
          %v2123 = vmul.f32 %v2121, %v2121
          %v2124 = vmul.f32 %v2122, %v2122
          %v2125 = vsel %vm810, %v2123, 0.0
          %2126 = vadd.xlane.f32.xlu0 %v2125
          %v2127 = vpop.xlane.xlu0 %2126
          %v2128 = vsel %vm810, %v2124, 0.0
          %2129 = vadd.xlane.f32.xlu0 %v2128
          %v2130 = vpop.xlane.xlu0 %2129
          %v2131 = vmul.f32 %v2127, %v1867
          %v2132 = vmul.f32 %v2130, %v1867
          %v2133 = vadd.f32 %v2131, 1e-05
          %v2134 = vadd.f32 %v2132, 1e-05
          %v2135 = vrsqrt.pop %v2133
          %v2136 = vrsqrt.pop %v2134
          %v2137 = vmul.f32 %v2121, %v2135
          %v2138 = vmul.f32 %v2122, %v2136
          %v2140 = vlaneseq
          %v2141 = vshrl.u32 %v2140, 7
          %v2142 = vsub.s32 0, %v2141
          %v2143 = vrot.slane %v2111, %v2142
          %v2145 = vmul.f32 %v2137, %v2143
          %v2146 = vmul.f32 %v2138, %v2143
          %v2148 = vlaneseq
          %v2149 = vshrl.u32 %v2148, 7
          %v2150 = vsub.s32 0, %v2149
          %v2151 = vrot.slane %v2112, %v2150
          %v2153 = vadd.f32 %v2145, %v2151
          %v2154 = vadd.f32 %v2146, %v2151
          %v2155 = vcombine.high %v2153, 0.0
          %v2157 = vunpack.c.l.s4 1983009808
          %v2158 = vunpack.c.0.s8 %v2157
          %v2159 = vlaneseq
          %v2160 = vshrl.u32 %v2159, 7
          %v2161 = vsub.s32 %v2158, %v2160
          %v2162 = vrot.slane %v2153, %v2161
          %v2164 = vunpack.c.l.s4 1983009808
          %v2165 = vunpack.c.0.s8 %v2164
          %v2166 = vlaneseq
          %v2167 = vshrl.u32 %v2166, 7
          %v2168 = vsub.s32 %v2165, %v2167
          %v2169 = vrot.slane %v2155, %v2168
          %v2170 = vcombine.high %v2154, 0.0
          %v2172 = vunpack.c.l.s4 1983009808
          %v2173 = vunpack.c.0.s8 %v2172
          %v2174 = vlaneseq
          %v2175 = vshrl.u32 %v2174, 7
          %v2176 = vsub.s32 %v2173, %v2175
          %v2177 = vrot.slane %v2154, %v2176
          %v2179 = vunpack.c.l.s4 1983009808
          %v2180 = vunpack.c.0.s8 %v2179
          %v2181 = vlaneseq
          %v2182 = vshrl.u32 %v2181, 7
          %v2183 = vsub.s32 %v2180, %v2182
          %v2184 = vrot.slane %v2170, %v2183
          %v2185 = vcombine.low %v2162, %v2177
          %v2186 = vcombine.high %v2162, %v2177
          %v2188 = vunpack.c.l.s4 1934713408
          %v2189 = vunpack.c.0.s8 %v2188
          %v2190 = vlaneseq
          %v2191 = vshrl.u32 %v2190, 7
          %v2192 = vsub.s32 %v2189, %v2191
          %v2193 = vrot.slane %v2185, %v2192
          %v2195 = vunpack.c.l.s4 1934713408
          %v2196 = vunpack.c.0.s8 %v2195
          %v2197 = vlaneseq
          %v2198 = vshrl.u32 %v2197, 7
          %v2199 = vsub.s32 %v2196, %v2198
          %v2200 = vrot.slane %v2186, %v2199
          %v2201 = vcombine.low %v2169, %v2184
          %v2202 = vcombine.high %v2169, %v2184
          %v2204 = vunpack.c.l.s4 1934713408
          %v2205 = vunpack.c.0.s8 %v2204
          %v2206 = vlaneseq
          %v2207 = vshrl.u32 %v2206, 7
          %v2208 = vsub.s32 %v2205, %v2207
          %v2209 = vrot.slane %v2201, %v2208
          %v2211 = vunpack.c.l.s4 1934713408
          %v2212 = vunpack.c.0.s8 %v2211
          %v2213 = vlaneseq
          %v2214 = vshrl.u32 %v2213, 7
          %v2215 = vsub.s32 %v2212, %v2214
          %v2216 = vrot.slane %v2202, %v2215
          %v2217 = vcombine.high %v2193, 0.0
          %v2218 = vcombine.high %v2200, 0.0
          %v2219 = vcombine.high %v2209, 0.0
          %v2220 = vcombine.high %v2216, 0.0
          %vm2221 = vcmask 254976
          %2222 = vst.msk [vmem:[#allocation11] sm:$0x3] %vm2221, %v2193
          %2223 = vst.msk [vmem:[#allocation11 + $0x2] sm:$0x3] %vm2221, %v2217
          %2224 = vst.msk [vmem:[#allocation11 + $0x4] sm:$0x3] %vm2221, %v2200
          %2225 = vst.msk [vmem:[#allocation11 + $0x6] sm:$0x3] %vm2221, %v2218
          %2226 = vst.msk [vmem:[#allocation11 + $0x8] sm:$0x3] %vm2221, %v2209
          %2227 = vst.msk [vmem:[#allocation11 + $0xa] sm:$0x3] %vm2221, %v2219
          %2228 = vst.msk [vmem:[#allocation11 + $0xc] sm:$0x3] %vm2221, %v2216
          %2229 = vst.msk [vmem:[#allocation11 + $0xe] sm:$0x3] %vm2221, %v2220
        $region104: #{entity_context_encoder_forward.1} parent=79 // pred_fallthru
          _
        // Predicated region
        $region105: #{entity_context_encoder_forward.1} parent=79 // pred_check
          %p2230 = pneg %p420
        $region106: #{entity_context_encoder_forward.1} parent=79 // pred_check_branch
          %2232 = sbr.rel (%p2230) target = $region108
        $region107: #{entity_context_encoder_forward.1} parent=79 // pred_region
          %s2234 = ssub.s32 256, 256
          %2235 = vsyncadd [#allocation5], %s2234
          %s2236 = sshll.u32 [#allocation11], 4
          %s2237 = int_to_ptr.vmem [resolvable:$true] %s2236
          %2242 = dma.vmem_to_hbm [thread:$0]  %s2237, 256, %s15, [#allocation5], 32, 32, 2
        $region108: #{entity_context_encoder_forward.1} parent=79 // pred_fallthru
          _
        // Predicated region
        $region109: #{entity_context_encoder_forward.1} parent=79 // pred_check
          %p2243 = pneg %p420
        $region110: #{entity_context_encoder_forward.1} parent=79 // pred_check_branch
          %2245 = sbr.rel (%p2243) target = $region112
        $region111: #{entity_context_encoder_forward.1} parent=79 // pred_region
          %2246 = dma.done [#allocation5], 256
        $region112: #{entity_context_encoder_forward.1} parent=79 // pred_fallthru
          _
      $region80: #{entity_context_encoder_forward.1} parent=5 // pred_fallthru
        _
      %p2247 = scmp.le.s32.totalorder 2, %s27
      // Predicated region
      $region113: #{entity_context_encoder_forward.1} parent=5 // pred_check
        %p2248 = pneg %p2247
      $region114: #{entity_context_encoder_forward.1} parent=5 // pred_check_branch
        %2250 = sbr.rel (%p2248) target = $region116
      $region115: #{entity_context_encoder_forward.1} parent=5 // pred_region
        %s2251 = ssub.s32 %s27, 2
      $region116: #{entity_context_encoder_forward.1} parent=5 // pred_fallthru
        _
    $region6: #{entity_context_encoder_forward.1} parent=1 // loop_footer
      %s31 = sadd.s32 1, %s27
    $region7: #{entity_context_encoder_forward.1} parent=1 // loop_footer_branch
      %26 = sbr.rel target = $region3
    $region8: #{entity_context_encoder_forward.1} parent=1 // loop_exit
      _
    %2252 = vsyncpa [#allocation4], 1
    %s2253 = scalar_lea.sflag [#allocation4], 1
    %2254 = vsyncpa %s2253, 1
    %2255 = vsyncpa [#allocation7], 1
    %s2256 = scalar_lea.sflag [#allocation7], 1
    %2257 = vsyncpa %s2256, 1
    %2258 = vsyncpa [#allocation10], 1
    %2259 = vsyncpa [#allocation5], 1
    %s2260 = scalar_lea.sflag [#allocation5], 1
    %2261 = vsyncpa %s2260, 1

</llo_original>
